<compile_context>
chip_gen: v7x
topology: tpu7x:2x2x1
jax: 0.10.0
libtpu: 0.0.40
codegen_flags: <defaults>
</compile_context>

<pallas_src>
import jax
import jax.numpy as jnp
from jax.experimental import pallas as pl
from jax.experimental.pallas import tpu as pltpu

BN_EPS = 1e-5
CP = 128          # lane-padded channel width used for every layer


# ------------------------------ Pallas kernel -------------------------------

def _conv_bn_relu_pool(x_pad, w_ref, b_ref, pool=4):
    """One ConvBlock on a single sample, entirely in VMEM/registers.

    x_pad : (L+2, CP) float32 value; rows 0 and L+1 are the conv zero-padding.
    w_ref : (3, CP, CP) bfloat16 ref, BN-folded weights, w_ref[k][cin, cout].
    b_ref : (1, CP) float32 ref, BN-folded bias.
    Returns (L // pool, CP) float32.
    """
    L = x_pad.shape[0] - 2
    acc = jnp.dot(x_pad[0:L, :].astype(jnp.bfloat16), w_ref[0],
                  preferred_element_type=jnp.float32)
    acc = acc + jnp.dot(x_pad[1:L + 1, :].astype(jnp.bfloat16), w_ref[1],
                        preferred_element_type=jnp.float32)
    acc = acc + jnp.dot(x_pad[2:L + 2, :].astype(jnp.bfloat16), w_ref[2],
                        preferred_element_type=jnp.float32)
    acc = jnp.maximum(acc + b_ref[...], 0.0)          # folded BN bias + ReLU (f32)
    # MaxPool1d(kernel=4, stride=4) in-register; lane (channel) dim untouched.
    return jnp.max(acc.reshape(L // pool, pool, acc.shape[-1]), axis=1)


def _net_kernel(x_ref, w1, b1, w2, b2, w3, b3, fw1, fb1, fw2, fb2,
                o_ref, s1, s2):
    # Zero the scratch activations so their first/last rows serve as the next
    # conv's zero padding.  Re-done every grid step: scratch is not guaranteed
    # zeroed and may be per-core under "parallel" semantics.
    s1[...] = jnp.zeros(s1.shape, s1.dtype)
    s2[...] = jnp.zeros(s2.shape, s2.dtype)

    h = _conv_bn_relu_pool(x_ref[0], w1, b1)          # (L/4,  CP)
    s1[pl.ds(1, h.shape[0]), :] = h
    h = _conv_bn_relu_pool(s1[...], w2, b2)           # (L/16, CP)
    s2[pl.ds(1, h.shape[0]), :] = h
    h = _conv_bn_relu_pool(s2[...], w3, b3)           # (L/64, CP) == (1, CP)

    # Fused classifier head: Linear -> ReLU -> Linear (bf16 MXU, f32 epilogue).
    t = jnp.dot(h.astype(jnp.bfloat16), fw1[...],
                preferred_element_type=jnp.float32) + fb1[...]
    t = jnp.maximum(t, 0.0)
    o = jnp.dot(t.astype(jnp.bfloat16), fw2[...],
                preferred_element_type=jnp.float32) + fb2[...]
    o_ref[0] = o


# --------------------------- parameter packing ------------------------------

def fold_bn(w, b, gamma, beta, mean, var, eps=BN_EPS):
    """Fold eval-mode BatchNorm1d into the preceding Conv1d weight/bias."""
    scale = gamma / jnp.sqrt(var + eps)               # (Cout,)
    return w * scale[:, None, None], (b - mean) * scale + beta


def pack_params(params):
    """Fold BN, transpose to [tap, cin, cout] / [in, out], zero-pad every
    channel dim to CP=128 lanes, and cast matmul operands to bfloat16."""
    convs = []
    for (w, b, gamma, beta, mean, var) in params["blocks"]:
        wf, bf = fold_bn(w, b, gamma, beta, mean, var)
        cout, cin, k = wf.shape
        wk = jnp.zeros((k, CP, CP), jnp.float32).at[:, :cin, :cout].set(
            jnp.transpose(wf, (2, 1, 0)))             # (tap, cin, cout)
        bk = jnp.zeros((1, CP), jnp.float32).at[:, :cout].set(bf[None, :])
        convs.append((wk.astype(jnp.bfloat16), bk))

    def pack_fc(w, b):                                # w: (out_features, in_features)
        out_f, in_f = w.shape
        wm = jnp.zeros((CP, CP), jnp.float32).at[:in_f, :out_f].set(w.T)
        bm = jnp.zeros((1, CP), jnp.float32).at[:, :out_f].set(b[None, :])
        return wm.astype(jnp.bfloat16), bm

    return (convs,
            pack_fc(params["fc_w"], params["fc_b"]),
            pack_fc(params["out_w"], params["out_b"]))


# ------------------------------- forward ------------------------------------

def audio_cnn_forward(x, params, n_classes):
    """x: (N, in_size, L) float32 (NCL, like the PyTorch module).  L must be 64
    so that three MaxPool1d(4) leave length 1 and the flatten matches
    nn.Linear(8*in_size, n_hidden)."""
    N, cin, L = x.shape
    assert L == 64, "audio_CNN_classifier's fc layer requires seq_len == 64"
    (c1, c2, c3), (fw1, fb1), (fw2, fb2) = pack_params(params)

    # One-time input relayout: NCL -> [length, channel], channels padded to 128
    # lanes, length padded by 1 on each side (Conv1d padding=1).
    xp = jnp.pad(jnp.transpose(x.astype(jnp.float32), (0, 2, 1)),
                 ((0, 0), (1, 1), (0, CP - cin)))

    L2, L3, Lo = L // 4, L // 16, L // 64
    conv_w_spec = pl.BlockSpec((3, CP, CP), lambda n: (0, 0, 0))
    vec_spec = pl.BlockSpec((1, CP), lambda n: (0, 0))
    fc_w_spec = pl.BlockSpec((CP, CP), lambda n: (0, 0))

    out = pl.pallas_call(
        _net_kernel,
        out_shape=jax.ShapeDtypeStruct((N, Lo, CP), jnp.float32),
        grid_spec=pltpu.PrefetchScalarGridSpec(
            num_scalar_prefetch=0,
            grid=(N,),
            in_specs=[
                pl.BlockSpec((1, L + 2, CP), lambda n: (n, 0, 0)),   # activation
                conv_w_spec, vec_spec,                               # block 1
                conv_w_spec, vec_spec,                               # block 2
                conv_w_spec, vec_spec,                               # block 3
                fc_w_spec, vec_spec,                                 # fc
                fc_w_spec, vec_spec,                                 # out
            ],
            out_specs=pl.BlockSpec((1, Lo, CP), lambda n: (n, 0, 0)),
            scratch_shapes=[
                pltpu.VMEM((L2 + 2, CP), jnp.float32),   # block-2 padded input
                pltpu.VMEM((L3 + 2, CP), jnp.float32),   # block-3 padded input
            ],
        ),
        compiler_params=pltpu.CompilerParams(
            dimension_semantics=("parallel",)),
    )(xp, c1[0], c1[1], c2[0], c2[1], c3[0], c3[1], fw1, fb1, fw2, fb2)

    return out.reshape(N, Lo * CP)[:, :n_classes]


# --------------------------- pure-JAX reference -----------------------------

def ref_forward(x, params, mimic_kernel_precision=False, eps=BN_EPS):
    """Reference for the module's eval-mode forward.

    mimic_kernel_precision=False: exact float32 forward (HIGHEST precision).
    mimic_kernel_precision=True : same math as the Pallas kernel (BN folded into
      the conv, matmul operands rounded to bfloat16, f32 accumulation).
    """
    hi = jax.lax.Precision.HIGHEST

    def rnd(a):
        if mimic_kernel_precision:
            return a.astype(jnp.bfloat16).astype(jnp.float32)
        return a

    h = x.astype(jnp.float32)
    for (w, b, gamma, beta, mean, var) in params["blocks"]:
        if mimic_kernel_precision:
            w_eff, b_eff = fold_bn(w, b, gamma, beta, mean, var, eps)
        else:
            w_eff, b_eff = w, b
        n, _, length = h.shape
        cout = w.shape[0]
        hpad = jnp.pad(h, ((0, 0), (0, 0), (1, 1)))
        y = jnp.zeros((n, cout, length), jnp.float32)
        for k in range(3):
            y = y + jnp.einsum("ncl,oc->nol", rnd(hpad[:, :, k:k + length]),
                               rnd(w_eff[:, :, k]), precision=hi)
        y = y + b_eff[None, :, None]
        if not mimic_kernel_precision:
            y = ((y - mean[None, :, None]) / jnp.sqrt(var[None, :, None] + eps)
                 * gamma[None, :, None] + beta[None, :, None])
        y = jnp.maximum(y, 0.0)
        h = y.reshape(n, cout, length // 4, 4).max(axis=-1)       # MaxPool1d(4,4)

    h = h.reshape(h.shape[0], -1)                                 # torch .view(N,-1)
    h = jnp.maximum(
        jnp.einsum("nf,hf->nh", rnd(h), rnd(params["fc_w"]), precision=hi)
        + params["fc_b"], 0.0)
    return (jnp.einsum("nh,oh->no", rnd(h), rnd(params["out_w"]), precision=hi)
            + params["out_b"])


# ---------------------------------- main -------------------------------------

def make_params(key, in_size, n_hidden, n_classes):
    keys = jax.random.split(key, 22)
    chans = [in_size, 2 * in_size, 4 * in_size, 8 * in_size]
    blocks, i = [], 0
    for blk in range(3):
        cin, cout = chans[blk], chans[blk + 1]
        w = 0.2 * jax.random.normal(keys[i + 0], (cout, cin, 3), jnp.float32)
        bias = 0.1 * jax.random.normal(keys[i + 1], (cout,), jnp.float32)
        gamma = 1.0 + 0.1 * jax.random.normal(keys[i + 2], (cout,), jnp.float32)
        beta = 0.1 * jax.random.normal(keys[i + 3], (cout,), jnp.float32)
        mean = 0.1 * jax.random.normal(keys[i + 4], (cout,), jnp.float32)
        var = 1.0 + 0.2 * jax.random.uniform(keys[i + 5], (cout,), jnp.float32)
        blocks.append((w, bias, gamma, beta, mean, var))
        i += 6
    fc_w = 0.2 * jax.random.normal(keys[18], (n_hidden, 8 * in_size), jnp.float32)
    fc_b = 0.1 * jax.random.normal(keys[19], (n_hidden,), jnp.float32)
    out_w = 0.2 * jax.random.normal(keys[20], (n_classes, n_hidden), jnp.float32)
    out_b = 0.1 * jax.random.normal(keys[21], (n_classes,), jnp.float32)
    return {"blocks": blocks, "fc_w": fc_w, "fc_b": fc_b,
            "out_w": out_w, "out_b": out_b}


if __name__ == "__main__":
    batch, in_size, n_hidden, n_classes = 2, 4, 32, 10
    seq_len = 64     # 3x MaxPool1d(4) -> length 1, matching Linear(8*in_size, n_hidden)

    key = jax.random.PRNGKey(0)
    kx, kp = jax.random.split(key)
    x = jax.random.normal(kx, (batch, in_size, seq_len), jnp.float32)   # NCL
    params = make_params(kp, in_size, n_hidden, n_classes)

    fwd = jax.jit(lambda xx, pp: audio_cnn_forward(xx, pp, n_classes))
    out = jax.block_until_ready(fwd(x, params))
    assert out.shape == (batch, n_classes), out.shape

    # Tight check: reference that mimics the kernel's precision choices exactly
    # (folded BN, bf16 matmul operands, f32 accumulation) -> only summation-order
    # differences remain.
    ref_tight = jax.block_until_ready(
        ref_forward(x, params, mimic_kernel_precision=True))
    err_tight = float(jnp.max(jnp.abs(out - ref_tight)))
    assert jnp.allclose(out, ref_tight, atol=2e-3, rtol=2e-3), err_tight

    # Semantics check vs the exact float32 eval-mode module forward; the only
    # approximation in the kernel is bf16 rounding of matmul operands.
    ref_f32 = jax.block_until_ready(
        ref_forward(x, params, mimic_kernel_precision=False))
    err_f32 = float(jnp.max(jnp.abs(out - ref_f32)))
    assert jnp.allclose(out, ref_f32, atol=5e-2, rtol=5e-2), err_f32

    print("KERNEL_OK")
</pallas_src>

<mosaic_0001>
module attributes {stable_mosaic.version = 11 : i64} {
  func.func @_net_kernel(%arg0: i32, %arg1: memref<1x66x128xf32, #tpu.memory_space<vmem>>, %arg2: memref<3x128x128xbf16, #tpu.memory_space<vmem>>, %arg3: memref<1x128xf32, #tpu.memory_space<vmem>>, %arg4: memref<3x128x128xbf16, #tpu.memory_space<vmem>>, %arg5: memref<1x128xf32, #tpu.memory_space<vmem>>, %arg6: memref<3x128x128xbf16, #tpu.memory_space<vmem>>, %arg7: memref<1x128xf32, #tpu.memory_space<vmem>>, %arg8: memref<128x128xbf16, #tpu.memory_space<vmem>>, %arg9: memref<1x128xf32, #tpu.memory_space<vmem>>, %arg10: memref<128x128xbf16, #tpu.memory_space<vmem>>, %arg11: memref<1x128xf32, #tpu.memory_space<vmem>>, %arg12: memref<1x1x128xf32, #tpu.memory_space<vmem>>, %arg13: memref<18x128xf32, #tpu.memory_space<vmem>>, %arg14: memref<6x128xf32, #tpu.memory_space<vmem>>) attributes {dimension_semantics = [#tpu.dimension_semantics<parallel>], iteration_bounds = array<i64: 2>, scalar_prefetch = 0 : i64, scratch_operands = 2 : i64, tpu.core_type = #tpu.core_type<tc>, window_params = [{transform_indices = @transform_0, window_bounds = array<i64: 1, 66, 128>}, {pipeline_mode = #tpu.pipeline_mode<synchronous>, transform_indices = @transform_1, window_bounds = array<i64: 3, 128, 128>}, {pipeline_mode = #tpu.pipeline_mode<synchronous>, transform_indices = @transform_2, window_bounds = array<i64: 1, 128>}, {pipeline_mode = #tpu.pipeline_mode<synchronous>, transform_indices = @transform_3, window_bounds = array<i64: 3, 128, 128>}, {pipeline_mode = #tpu.pipeline_mode<synchronous>, transform_indices = @transform_4, window_bounds = array<i64: 1, 128>}, {pipeline_mode = #tpu.pipeline_mode<synchronous>, transform_indices = @transform_5, window_bounds = array<i64: 3, 128, 128>}, {pipeline_mode = #tpu.pipeline_mode<synchronous>, transform_indices = @transform_6, window_bounds = array<i64: 1, 128>}, {pipeline_mode = #tpu.pipeline_mode<synchronous>, transform_indices = @transform_7, window_bounds = array<i64: 128, 128>}, {pipeline_mode = #tpu.pipeline_mode<synchronous>, transform_indices = @transform_8, window_bounds = array<i64: 1, 128>}, {pipeline_mode = #tpu.pipeline_mode<synchronous>, transform_indices = @transform_9, window_bounds = array<i64: 128, 128>}, {pipeline_mode = #tpu.pipeline_mode<synchronous>, transform_indices = @transform_10, window_bounds = array<i64: 1, 128>}, {transform_indices = @transform_11, window_bounds = array<i64: 1, 1, 128>}]} {
    %cst = arith.constant 0.000000e+00 : f32
    %0 = vector.broadcast %cst : f32 to vector<18x128xf32>
    %c0 = arith.constant 0 : index
    %c0_0 = arith.constant 0 : index
    %1 = vector.load %arg13[%c0, %c0_0] : memref<18x128xf32, #tpu.memory_space<vmem>>, vector<18x128xf32>
    tpu.vector_store %arg13[%c0, %c0_0], %0 {strides = array<i32>} : memref<18x128xf32, #tpu.memory_space<vmem>>, vector<18x128xf32>,
    %cst_1 = arith.constant 0.000000e+00 : f32
    %2 = vector.broadcast %cst_1 : f32 to vector<6x128xf32>
    %c0_2 = arith.constant 0 : index
    %c0_3 = arith.constant 0 : index
    %3 = vector.load %arg14[%c0_2, %c0_3] : memref<6x128xf32, #tpu.memory_space<vmem>>, vector<6x128xf32>
    tpu.vector_store %arg14[%c0_2, %c0_3], %2 {strides = array<i32>} : memref<6x128xf32, #tpu.memory_space<vmem>>, vector<6x128xf32>,
    %c0_4 = arith.constant 0 : index
    %c0_5 = arith.constant 0 : index
    %c0_6 = arith.constant 0 : index
    %4 = vector.load %arg1[%c0_4, %c0_5, %c0_6] : memref<1x66x128xf32, #tpu.memory_space<vmem>>, vector<1x66x128xf32>
    %5 = vector.shape_cast %4 : vector<1x66x128xf32> to vector<66x128xf32>
    %6 = vector.extract_strided_slice %5 {offsets = [0, 0], sizes = [64, 128], strides = [1, 1]} : vector<66x128xf32> to vector<64x128xf32>
    %7 = arith.truncf %6 : vector<64x128xf32> to vector<64x128xbf16>
    %c0_7 = arith.constant 0 : index
    %c0_8 = arith.constant 0 : index
    %c0_9 = arith.constant 0 : index
    %8 = vector.load %arg2[%c0_7, %c0_8, %c0_9] : memref<3x128x128xbf16, #tpu.memory_space<vmem>>, vector<1x128x128xbf16>
    %9 = vector.shape_cast %8 : vector<1x128x128xbf16> to vector<128x128xbf16>
    %cst_10 = arith.constant dense<0.000000e+00> : vector<64x128xf32>
    %10 = tpu.matmul %7, %9, %cst_10 {dimension_numbers = #tpu.dot_dimension_numbers<[1], [0], [0], [1], [0, 0, 1, 1], [], []>} : vector<64x128xbf16>, vector<128x128xbf16>, vector<64x128xf32> -> vector<64x128xf32>
    %11 = vector.extract_strided_slice %5 {offsets = [1, 0], sizes = [64, 128], strides = [1, 1]} : vector<66x128xf32> to vector<64x128xf32>
    %12 = arith.truncf %11 : vector<64x128xf32> to vector<64x128xbf16>
    %c1 = arith.constant 1 : index
    %c0_11 = arith.constant 0 : index
    %c0_12 = arith.constant 0 : index
    %13 = vector.load %arg2[%c1, %c0_11, %c0_12] : memref<3x128x128xbf16, #tpu.memory_space<vmem>>, vector<1x128x128xbf16>
    %14 = vector.shape_cast %13 : vector<1x128x128xbf16> to vector<128x128xbf16>
    %cst_13 = arith.constant dense<0.000000e+00> : vector<64x128xf32>
    %15 = tpu.matmul %12, %14, %cst_13 {dimension_numbers = #tpu.dot_dimension_numbers<[1], [0], [0], [1], [0, 0, 1, 1], [], []>} : vector<64x128xbf16>, vector<128x128xbf16>, vector<64x128xf32> -> vector<64x128xf32>
    %16 = arith.addf %10, %15 : vector<64x128xf32>
    %17 = vector.extract_strided_slice %5 {offsets = [2, 0], sizes = [64, 128], strides = [1, 1]} : vector<66x128xf32> to vector<64x128xf32>
    %18 = arith.truncf %17 : vector<64x128xf32> to vector<64x128xbf16>
    %c2 = arith.constant 2 : index
    %c0_14 = arith.constant 0 : index
    %c0_15 = arith.constant 0 : index
    %19 = vector.load %arg2[%c2, %c0_14, %c0_15] : memref<3x128x128xbf16, #tpu.memory_space<vmem>>, vector<1x128x128xbf16>
    %20 = vector.shape_cast %19 : vector<1x128x128xbf16> to vector<128x128xbf16>
    %cst_16 = arith.constant dense<0.000000e+00> : vector<64x128xf32>
    %21 = tpu.matmul %18, %20, %cst_16 {dimension_numbers = #tpu.dot_dimension_numbers<[1], [0], [0], [1], [0, 0, 1, 1], [], []>} : vector<64x128xbf16>, vector<128x128xbf16>, vector<64x128xf32> -> vector<64x128xf32>
    %22 = arith.addf %16, %21 : vector<64x128xf32>
    %c0_17 = arith.constant 0 : index
    %c0_18 = arith.constant 0 : index
    %23 = vector.load %arg3[%c0_17, %c0_18] : memref<1x128xf32, #tpu.memory_space<vmem>>, vector<1x128xf32>
    %24 = vector.broadcast %23 : vector<1x128xf32> to vector<64x128xf32>
    %25 = arith.addf %22, %24 : vector<64x128xf32>
    %cst_19 = arith.constant 0.000000e+00 : f32
    %26 = vector.broadcast %cst_19 : f32 to vector<64x128xf32>
    %27 = arith.maximumf %25, %26 : vector<64x128xf32>
    %28 = vector.shape_cast %27 : vector<64x128xf32> to vector<16x4x128xf32>
    %cst_20 = arith.constant dense<0xFF800000> : vector<16x128xf32>
    %29 = vector.multi_reduction <maximumf>, %28, %cst_20 [1] : vector<16x4x128xf32> to vector<16x128xf32>
    %c1_21 = arith.constant 1 : index
    %c0_22 = arith.constant 0 : index
    %30 = vector.load %arg13[%c1_21, %c0_22] : memref<18x128xf32, #tpu.memory_space<vmem>>, vector<16x128xf32>
    tpu.vector_store %arg13[%c1_21, %c0_22], %29 {strides = array<i32>} : memref<18x128xf32, #tpu.memory_space<vmem>>, vector<16x128xf32>,
    %c0_23 = arith.constant 0 : index
    %c0_24 = arith.constant 0 : index
    %31 = vector.load %arg13[%c0_23, %c0_24] : memref<18x128xf32, #tpu.memory_space<vmem>>, vector<18x128xf32>
    %32 = vector.extract_strided_slice %31 {offsets = [0, 0], sizes = [16, 128], strides = [1, 1]} : vector<18x128xf32> to vector<16x128xf32>
    %33 = arith.truncf %32 : vector<16x128xf32> to vector<16x128xbf16>
    %c0_25 = arith.constant 0 : index
    %c0_26 = arith.constant 0 : index
    %c0_27 = arith.constant 0 : index
    %34 = vector.load %arg4[%c0_25, %c0_26, %c0_27] : memref<3x128x128xbf16, #tpu.memory_space<vmem>>, vector<1x128x128xbf16>
    %35 = vector.shape_cast %34 : vector<1x128x128xbf16> to vector<128x128xbf16>
    %cst_28 = arith.constant dense<0.000000e+00> : vector<16x128xf32>
    %36 = tpu.matmul %33, %35, %cst_28 {dimension_numbers = #tpu.dot_dimension_numbers<[1], [0], [0], [1], [0, 0, 1, 1], [], []>} : vector<16x128xbf16>, vector<128x128xbf16>, vector<16x128xf32> -> vector<16x128xf32>
    %37 = vector.extract_strided_slice %31 {offsets = [1, 0], sizes = [16, 128], strides = [1, 1]} : vector<18x128xf32> to vector<16x128xf32>
    %38 = arith.truncf %37 : vector<16x128xf32> to vector<16x128xbf16>
    %c1_29 = arith.constant 1 : index
    %c0_30 = arith.constant 0 : index
    %c0_31 = arith.constant 0 : index
    %39 = vector.load %arg4[%c1_29, %c0_30, %c0_31] : memref<3x128x128xbf16, #tpu.memory_space<vmem>>, vector<1x128x128xbf16>
    %40 = vector.shape_cast %39 : vector<1x128x128xbf16> to vector<128x128xbf16>
    %cst_32 = arith.constant dense<0.000000e+00> : vector<16x128xf32>
    %41 = tpu.matmul %38, %40, %cst_32 {dimension_numbers = #tpu.dot_dimension_numbers<[1], [0], [0], [1], [0, 0, 1, 1], [], []>} : vector<16x128xbf16>, vector<128x128xbf16>, vector<16x128xf32> -> vector<16x128xf32>
    %42 = arith.addf %36, %41 : vector<16x128xf32>
    %43 = vector.extract_strided_slice %31 {offsets = [2, 0], sizes = [16, 128], strides = [1, 1]} : vector<18x128xf32> to vector<16x128xf32>
    %44 = arith.truncf %43 : vector<16x128xf32> to vector<16x128xbf16>
    %c2_33 = arith.constant 2 : index
    %c0_34 = arith.constant 0 : index
    %c0_35 = arith.constant 0 : index
    %45 = vector.load %arg4[%c2_33, %c0_34, %c0_35] : memref<3x128x128xbf16, #tpu.memory_space<vmem>>, vector<1x128x128xbf16>
    %46 = vector.shape_cast %45 : vector<1x128x128xbf16> to vector<128x128xbf16>
    %cst_36 = arith.constant dense<0.000000e+00> : vector<16x128xf32>
    %47 = tpu.matmul %44, %46, %cst_36 {dimension_numbers = #tpu.dot_dimension_numbers<[1], [0], [0], [1], [0, 0, 1, 1], [], []>} : vector<16x128xbf16>, vector<128x128xbf16>, vector<16x128xf32> -> vector<16x128xf32>
    %48 = arith.addf %42, %47 : vector<16x128xf32>
    %c0_37 = arith.constant 0 : index
    %c0_38 = arith.constant 0 : index
    %49 = vector.load %arg5[%c0_37, %c0_38] : memref<1x128xf32, #tpu.memory_space<vmem>>, vector<1x128xf32>
    %50 = vector.broadcast %49 : vector<1x128xf32> to vector<16x128xf32>
    %51 = arith.addf %48, %50 : vector<16x128xf32>
    %cst_39 = arith.constant 0.000000e+00 : f32
    %52 = vector.broadcast %cst_39 : f32 to vector<16x128xf32>
    %53 = arith.maximumf %51, %52 : vector<16x128xf32>
    %54 = vector.shape_cast %53 : vector<16x128xf32> to vector<4x4x128xf32>
    %cst_40 = arith.constant dense<0xFF800000> : vector<4x128xf32>
    %55 = vector.multi_reduction <maximumf>, %54, %cst_40 [1] : vector<4x4x128xf32> to vector<4x128xf32>
    %c1_41 = arith.constant 1 : index
    %c0_42 = arith.constant 0 : index
    %56 = vector.load %arg14[%c1_41, %c0_42] : memref<6x128xf32, #tpu.memory_space<vmem>>, vector<4x128xf32>
    tpu.vector_store %arg14[%c1_41, %c0_42], %55 {strides = array<i32>} : memref<6x128xf32, #tpu.memory_space<vmem>>, vector<4x128xf32>,
    %c0_43 = arith.constant 0 : index
    %c0_44 = arith.constant 0 : index
    %57 = vector.load %arg14[%c0_43, %c0_44] : memref<6x128xf32, #tpu.memory_space<vmem>>, vector<6x128xf32>
    %58 = vector.extract_strided_slice %57 {offsets = [0, 0], sizes = [4, 128], strides = [1, 1]} : vector<6x128xf32> to vector<4x128xf32>
    %59 = arith.truncf %58 : vector<4x128xf32> to vector<4x128xbf16>
    %c0_45 = arith.constant 0 : index
    %c0_46 = arith.constant 0 : index
    %c0_47 = arith.constant 0 : index
    %60 = vector.load %arg6[%c0_45, %c0_46, %c0_47] : memref<3x128x128xbf16, #tpu.memory_space<vmem>>, vector<1x128x128xbf16>
    %61 = vector.shape_cast %60 : vector<1x128x128xbf16> to vector<128x128xbf16>
    %cst_48 = arith.constant dense<0.000000e+00> : vector<4x128xf32>
    %62 = tpu.matmul %59, %61, %cst_48 {dimension_numbers = #tpu.dot_dimension_numbers<[1], [0], [0], [1], [0, 0, 1, 1], [], []>} : vector<4x128xbf16>, vector<128x128xbf16>, vector<4x128xf32> -> vector<4x128xf32>
    %63 = vector.extract_strided_slice %57 {offsets = [1, 0], sizes = [4, 128], strides = [1, 1]} : vector<6x128xf32> to vector<4x128xf32>
    %64 = arith.truncf %63 : vector<4x128xf32> to vector<4x128xbf16>
    %c1_49 = arith.constant 1 : index
    %c0_50 = arith.constant 0 : index
    %c0_51 = arith.constant 0 : index
    %65 = vector.load %arg6[%c1_49, %c0_50, %c0_51] : memref<3x128x128xbf16, #tpu.memory_space<vmem>>, vector<1x128x128xbf16>
    %66 = vector.shape_cast %65 : vector<1x128x128xbf16> to vector<128x128xbf16>
    %cst_52 = arith.constant dense<0.000000e+00> : vector<4x128xf32>
    %67 = tpu.matmul %64, %66, %cst_52 {dimension_numbers = #tpu.dot_dimension_numbers<[1], [0], [0], [1], [0, 0, 1, 1], [], []>} : vector<4x128xbf16>, vector<128x128xbf16>, vector<4x128xf32> -> vector<4x128xf32>
    %68 = arith.addf %62, %67 : vector<4x128xf32>
    %69 = vector.extract_strided_slice %57 {offsets = [2, 0], sizes = [4, 128], strides = [1, 1]} : vector<6x128xf32> to vector<4x128xf32>
    %70 = arith.truncf %69 : vector<4x128xf32> to vector<4x128xbf16>
    %c2_53 = arith.constant 2 : index
    %c0_54 = arith.constant 0 : index
    %c0_55 = arith.constant 0 : index
    %71 = vector.load %arg6[%c2_53, %c0_54, %c0_55] : memref<3x128x128xbf16, #tpu.memory_space<vmem>>, vector<1x128x128xbf16>
    %72 = vector.shape_cast %71 : vector<1x128x128xbf16> to vector<128x128xbf16>
    %cst_56 = arith.constant dense<0.000000e+00> : vector<4x128xf32>
    %73 = tpu.matmul %70, %72, %cst_56 {dimension_numbers = #tpu.dot_dimension_numbers<[1], [0], [0], [1], [0, 0, 1, 1], [], []>} : vector<4x128xbf16>, vector<128x128xbf16>, vector<4x128xf32> -> vector<4x128xf32>
    %74 = arith.addf %68, %73 : vector<4x128xf32>
    %c0_57 = arith.constant 0 : index
    %c0_58 = arith.constant 0 : index
    %75 = vector.load %arg7[%c0_57, %c0_58] : memref<1x128xf32, #tpu.memory_space<vmem>>, vector<1x128xf32>
    %76 = vector.broadcast %75 : vector<1x128xf32> to vector<4x128xf32>
    %77 = arith.addf %74, %76 : vector<4x128xf32>
    %cst_59 = arith.constant 0.000000e+00 : f32
    %78 = vector.broadcast %cst_59 : f32 to vector<4x128xf32>
    %79 = arith.maximumf %77, %78 : vector<4x128xf32>
    %80 = vector.shape_cast %79 : vector<4x128xf32> to vector<1x4x128xf32>
    %cst_60 = arith.constant dense<0xFF800000> : vector<1x128xf32>
    %81 = vector.multi_reduction <maximumf>, %80, %cst_60 [1] : vector<1x4x128xf32> to vector<1x128xf32>
    %82 = arith.truncf %81 : vector<1x128xf32> to vector<1x128xbf16>
    %c0_61 = arith.constant 0 : index
    %c0_62 = arith.constant 0 : index
    %83 = vector.load %arg8[%c0_61, %c0_62] : memref<128x128xbf16, #tpu.memory_space<vmem>>, vector<128x128xbf16>
    %cst_63 = arith.constant dense<0.000000e+00> : vector<1x128xf32>
    %84 = tpu.matmul %82, %83, %cst_63 {dimension_numbers = #tpu.dot_dimension_numbers<[1], [0], [0], [1], [0, 0, 1, 1], [], []>} : vector<1x128xbf16>, vector<128x128xbf16>, vector<1x128xf32> -> vector<1x128xf32>
    %c0_64 = arith.constant 0 : index
    %c0_65 = arith.constant 0 : index
    %85 = vector.load %arg9[%c0_64, %c0_65] : memref<1x128xf32, #tpu.memory_space<vmem>>, vector<1x128xf32>
    %86 = arith.addf %84, %85 : vector<1x128xf32>
    %cst_66 = arith.constant 0.000000e+00 : f32
    %87 = vector.broadcast %cst_66 : f32 to vector<1x128xf32>
    %88 = arith.maximumf %86, %87 : vector<1x128xf32>
    %89 = arith.truncf %88 : vector<1x128xf32> to vector<1x128xbf16>
    %c0_67 = arith.constant 0 : index
    %c0_68 = arith.constant 0 : index
    %90 = vector.load %arg10[%c0_67, %c0_68] : memref<128x128xbf16, #tpu.memory_space<vmem>>, vector<128x128xbf16>
    %cst_69 = arith.constant dense<0.000000e+00> : vector<1x128xf32>
    %91 = tpu.matmul %89, %90, %cst_69 {dimension_numbers = #tpu.dot_dimension_numbers<[1], [0], [0], [1], [0, 0, 1, 1], [], []>} : vector<1x128xbf16>, vector<128x128xbf16>, vector<1x128xf32> -> vector<1x128xf32>
    %c0_70 = arith.constant 0 : index
    %c0_71 = arith.constant 0 : index
    %92 = vector.load %arg11[%c0_70, %c0_71] : memref<1x128xf32, #tpu.memory_space<vmem>>, vector<1x128xf32>
    %93 = arith.addf %91, %92 : vector<1x128xf32>
    %c0_72 = arith.constant 0 : index
    %c0_73 = arith.constant 0 : index
    %c0_74 = arith.constant 0 : index
    %94 = vector.load %arg12[%c0_72, %c0_73, %c0_74] : memref<1x1x128xf32, #tpu.memory_space<vmem>>, vector<1x1x128xf32>
    %95 = vector.shape_cast %94 : vector<1x1x128xf32> to vector<1x128xf32>
    %96 = vector.shape_cast %93 : vector<1x128xf32> to vector<1x1x128xf32>
    tpu.vector_store %arg12[%c0_72, %c0_73, %c0_74], %96 {strides = array<i32>} : memref<1x1x128xf32, #tpu.memory_space<vmem>>, vector<1x1x128xf32>,
    return
  }
  func.func @transform_0(%arg0: i32) -> (i32, i32, i32) {
    %c0_i32 = arith.constant 0 : i32
    %c0_i32_0 = arith.constant 0 : i32
    %c0_i32_1 = arith.constant 0 : i32
    return %arg0, %c0_i32, %c0_i32_0 : i32, i32, i32
  }
  func.func @transform_1(%arg0: i32) -> (i32, i32, i32) {
    %c0_i32 = arith.constant 0 : i32
    %c0_i32_0 = arith.constant 0 : i32
    %c0_i32_1 = arith.constant 0 : i32
    %c0_i32_2 = arith.constant 0 : i32
    return %c0_i32, %c0_i32_0, %c0_i32_1 : i32, i32, i32
  }
  func.func @transform_2(%arg0: i32) -> (i32, i32) {
    %c0_i32 = arith.constant 0 : i32
    %c0_i32_0 = arith.constant 0 : i32
    %c0_i32_1 = arith.constant 0 : i32
    return %c0_i32, %c0_i32_0 : i32, i32
  }
  func.func @transform_3(%arg0: i32) -> (i32, i32, i32) {
    %c0_i32 = arith.constant 0 : i32
    %c0_i32_0 = arith.constant 0 : i32
    %c0_i32_1 = arith.constant 0 : i32
    %c0_i32_2 = arith.constant 0 : i32
    return %c0_i32, %c0_i32_0, %c0_i32_1 : i32, i32, i32
  }
  func.func @transform_4(%arg0: i32) -> (i32, i32) {
    %c0_i32 = arith.constant 0 : i32
    %c0_i32_0 = arith.constant 0 : i32
    %c0_i32_1 = arith.constant 0 : i32
    return %c0_i32, %c0_i32_0 : i32, i32
  }
  func.func @transform_5(%arg0: i32) -> (i32, i32, i32) {
    %c0_i32 = arith.constant 0 : i32
    %c0_i32_0 = arith.constant 0 : i32
    %c0_i32_1 = arith.constant 0 : i32
    %c0_i32_2 = arith.constant 0 : i32
    return %c0_i32, %c0_i32_0, %c0_i32_1 : i32, i32, i32
  }
  func.func @transform_6(%arg0: i32) -> (i32, i32) {
    %c0_i32 = arith.constant 0 : i32
    %c0_i32_0 = arith.constant 0 : i32
    %c0_i32_1 = arith.constant 0 : i32
    return %c0_i32, %c0_i32_0 : i32, i32
  }
  func.func @transform_7(%arg0: i32) -> (i32, i32) {
    %c0_i32 = arith.constant 0 : i32
    %c0_i32_0 = arith.constant 0 : i32
    %c0_i32_1 = arith.constant 0 : i32
    return %c0_i32, %c0_i32_0 : i32, i32
  }
  func.func @transform_8(%arg0: i32) -> (i32, i32) {
    %c0_i32 = arith.constant 0 : i32
    %c0_i32_0 = arith.constant 0 : i32
    %c0_i32_1 = arith.constant 0 : i32
    return %c0_i32, %c0_i32_0 : i32, i32
  }
  func.func @transform_9(%arg0: i32) -> (i32, i32) {
    %c0_i32 = arith.constant 0 : i32
    %c0_i32_0 = arith.constant 0 : i32
    %c0_i32_1 = arith.constant 0 : i32
    return %c0_i32, %c0_i32_0 : i32, i32
  }
  func.func @transform_10(%arg0: i32) -> (i32, i32) {
    %c0_i32 = arith.constant 0 : i32
    %c0_i32_0 = arith.constant 0 : i32
    %c0_i32_1 = arith.constant 0 : i32
    return %c0_i32, %c0_i32_0 : i32, i32
  }
  func.func @transform_11(%arg0: i32) -> (i32, i32, i32) {
    %c0_i32 = arith.constant 0 : i32
    %c0_i32_0 = arith.constant 0 : i32
    %c0_i32_1 = arith.constant 0 : i32
    return %arg0, %c0_i32, %c0_i32_0 : i32, i32, i32
  }
}

</mosaic_0001>

<llo_original>
// kernel: _lambda_.1
$region0: #{_lambda_.1}
  #allocation0 [shape = 'u32[]', space=smem, size = 0x4, offset = 0x4, fixed_abs, tag = 'smem constant byte address 0x4 - core index']
  #allocation1 [shape = 'u32[144,128]{1,0:T(1,128)}', space=vmem, size = 0x12000, scoped, tag = 'internal scratch']
  #allocation2 [shape = 'f32[18,128]{1,0:T(8,128)}', space=vmem, size = 0x3000, scoped, tag = 'scratch operand']
  #allocation3 [shape = 'f32[6,128]{1,0:T(8,128)}', space=vmem, size = 0x1000, scoped, tag = 'scratch operand']
  %s0 = inlined_call_operand.vmem [shape: f32[2,66,128], index: 0, kind: input, shape index: {}]
  %s1 = inlined_call_operand.vmem [shape: bf16[3,128,128], index: 1, kind: input, shape index: {}]
  %s2 = inlined_call_operand.vmem [shape: f32[1,128], index: 2, kind: input, shape index: {}]
  %s3 = inlined_call_operand.vmem [shape: bf16[3,128,128], index: 3, kind: input, shape index: {}]
  %s4 = inlined_call_operand.vmem [shape: f32[1,128], index: 4, kind: input, shape index: {}]
  %s5 = inlined_call_operand.vmem [shape: bf16[3,128,128], index: 5, kind: input, shape index: {}]
  %s6 = inlined_call_operand.vmem [shape: f32[1,128], index: 6, kind: input, shape index: {}]
  %s7 = inlined_call_operand.vmem [shape: bf16[128,128], index: 7, kind: input, shape index: {}]
  %s8 = inlined_call_operand.vmem [shape: f32[1,128], index: 8, kind: input, shape index: {}]
  %s9 = inlined_call_operand.vmem [shape: bf16[128,128], index: 9, kind: input, shape index: {}]
  %s10 = inlined_call_operand.vmem [shape: f32[1,128], index: 10, kind: input, shape index: {}]
  %s11 = inlined_call_operand.hbm [shape: f32[2,1,128], index: 11, kind: output, shape index: {}]
  %s12 = sld [smem:[#allocation0]]
  $region77: #{_lambda_.1} parent=0
    _
  %s14 = ssub.s32 1, %s12
  %s15 = scalar_select 0, %s14, %s12
  $region1: #{_lambda_.1} parent=0
    #allocation4 [shape = 'u8[1024]{0}', space=vmem, size = 0x400, scoped, tag = 'output window, operand 0']
    #allocation5 [shape = 's32[2]{0}', space=sflag, size = 0x8, scoped, tag = 'scoped memory for _lambda_.1']
    %16 = vsyncpa [#allocation5], 0
    %s17 = scalar_lea.sflag [#allocation5], 1
    %18 = vsyncpa %s17, 0
    loop: start=0, step=1, limit=4
    $region2: #{_lambda_.1} parent=1 // loop_pre_header
      _
    $region3: #{_lambda_.1} parent=1 // loop_header
      %s20 = sphi 0, %s24
      %p21 = scmp.ge.s32.totalorder %s20, 4
      %s30 = sphi 0, %s32
      %s33 = sphi 0, %s30
      %s34 = sphi 0, %s33
      %s50 = sphi 0, %s34
      %s54 = sphi 0, %s54
      %s56 = sphi 0, %s54
      %s57 = sphi 0, %s56
      %s71 = sphi 0, %s57
      %s75 = sphi 0, %s75
      %s77 = sphi 0, %s75
      %s78 = sphi 0, %s77
      %s92 = sphi 0, %s78
      %s96 = sphi 0, %s96
      %s98 = sphi 0, %s96
      %s99 = sphi 0, %s98
      %s113 = sphi 0, %s99
      %s117 = sphi 0, %s117
      %s119 = sphi 0, %s117
      %s120 = sphi 0, %s119
      %s134 = sphi 0, %s120
      %s138 = sphi 0, %s138
      %s140 = sphi 0, %s138
      %s141 = sphi 0, %s140
      %s155 = sphi 0, %s141
      %s159 = sphi 0, %s159
      %s161 = sphi 0, %s159
      %s162 = sphi 0, %s161
      %s176 = sphi 0, %s162
      %s180 = sphi 0, %s180
      %s182 = sphi 0, %s180
      %s183 = sphi 0, %s182
      %s197 = sphi 0, %s183
      %s201 = sphi 0, %s201
      %s203 = sphi 0, %s201
      %s204 = sphi 0, %s203
      %s218 = sphi 0, %s204
      %s222 = sphi 0, %s222
      %s224 = sphi 0, %s222
      %s225 = sphi 0, %s224
      %s239 = sphi 0, %s225
      %s243 = sphi 0, %s243
      %s245 = sphi 0, %s243
      %s246 = sphi 0, %s245
      %s260 = sphi 0, %s246
      %s266 = sphi 0, %s268
      %s269 = sphi 0, %s266
      %s270 = sphi 0, %s269
      %s286 = sphi 0, %s270
    $region4: #{_lambda_.1} parent=1 // loop_header_branch
      %23 = sbr.rel (%p21) target = $region8
    $region5: #{_lambda_.1} parent=1 // loop_body
      %s25 = ssub.s32 %s20, 1
      %s26 = ssub.s32 %s20, 2
      %s27 = sadd.s32 %s20, 1
      %s28 = ssub.s32 %s20, %s27
      %p29 = scmp.eq.s32.totalorder %s28, 0
      %s31 = sadd.s32 %s30, 1
      %s32 = scalar_select %p29, %s30, %s31
      %p35 = pneg %p29
      %p36 = scmp.eq.s32.totalorder %s20, 1
      %p37 = por %p35, %p36
      %p38 = scmp.ne.s32.totalorder %s30, %s33
      %p39 = scmp.eq.s32.totalorder %s20, 0
      %p40 = por %p38, %p39
      %p41 = scmp.ne.s32.totalorder %s30, %s33
      %p42 = scmp.eq.s32.totalorder %s25, 1
      %p43 = por %p41, %p42
      %p44 = scmp.ne.s32.totalorder %s33, %s34
      %p45 = scmp.eq.s32.totalorder %s25, 0
      %p46 = por %p44, %p45
      %p47 = scmp.ne.s32.totalorder %s33, %s34
      %p48 = scmp.eq.s32.totalorder %s26, 1
      %p49 = por %p47, %p48
      %p51 = scmp.ne.s32.totalorder %s34, %s50
      %p52 = scmp.eq.s32.totalorder %s26, 0
      %p53 = por %p51, %p52
      %s55 = sadd.s32 %s54, 1
      %p58 = scmp.eq.s32.totalorder %s20, 1
      %p59 = scmp.ne.s32.totalorder %s54, %s56
      %p60 = scmp.eq.s32.totalorder %s20, 0
      %p61 = por %p59, %p60
      %p62 = scmp.ne.s32.totalorder %s54, %s56
      %p63 = scmp.eq.s32.totalorder %s25, 1
      %p64 = por %p62, %p63
      %p65 = scmp.ne.s32.totalorder %s56, %s57
      %p66 = scmp.eq.s32.totalorder %s25, 0
      %p67 = por %p65, %p66
      %p68 = scmp.ne.s32.totalorder %s56, %s57
      %p69 = scmp.eq.s32.totalorder %s26, 1
      %p70 = por %p68, %p69
      %p72 = scmp.ne.s32.totalorder %s57, %s71
      %p73 = scmp.eq.s32.totalorder %s26, 0
      %p74 = por %p72, %p73
      %s76 = sadd.s32 %s75, 1
      %p79 = scmp.eq.s32.totalorder %s20, 1
      %p80 = scmp.ne.s32.totalorder %s75, %s77
      %p81 = scmp.eq.s32.totalorder %s20, 0
      %p82 = por %p80, %p81
      %p83 = scmp.ne.s32.totalorder %s75, %s77
      %p84 = scmp.eq.s32.totalorder %s25, 1
      %p85 = por %p83, %p84
      %p86 = scmp.ne.s32.totalorder %s77, %s78
      %p87 = scmp.eq.s32.totalorder %s25, 0
      %p88 = por %p86, %p87
      %p89 = scmp.ne.s32.totalorder %s77, %s78
      %p90 = scmp.eq.s32.totalorder %s26, 1
      %p91 = por %p89, %p90
      %p93 = scmp.ne.s32.totalorder %s78, %s92
      %p94 = scmp.eq.s32.totalorder %s26, 0
      %p95 = por %p93, %p94
      %s97 = sadd.s32 %s96, 1
      %p100 = scmp.eq.s32.totalorder %s20, 1
      %p101 = scmp.ne.s32.totalorder %s96, %s98
      %p102 = scmp.eq.s32.totalorder %s20, 0
      %p103 = por %p101, %p102
      %p104 = scmp.ne.s32.totalorder %s96, %s98
      %p105 = scmp.eq.s32.totalorder %s25, 1
      %p106 = por %p104, %p105
      %p107 = scmp.ne.s32.totalorder %s98, %s99
      %p108 = scmp.eq.s32.totalorder %s25, 0
      %p109 = por %p107, %p108
      %p110 = scmp.ne.s32.totalorder %s98, %s99
      %p111 = scmp.eq.s32.totalorder %s26, 1
      %p112 = por %p110, %p111
      %p114 = scmp.ne.s32.totalorder %s99, %s113
      %p115 = scmp.eq.s32.totalorder %s26, 0
      %p116 = por %p114, %p115
      %s118 = sadd.s32 %s117, 1
      %p121 = scmp.eq.s32.totalorder %s20, 1
      %p122 = scmp.ne.s32.totalorder %s117, %s119
      %p123 = scmp.eq.s32.totalorder %s20, 0
      %p124 = por %p122, %p123
      %p125 = scmp.ne.s32.totalorder %s117, %s119
      %p126 = scmp.eq.s32.totalorder %s25, 1
      %p127 = por %p125, %p126
      %p128 = scmp.ne.s32.totalorder %s119, %s120
      %p129 = scmp.eq.s32.totalorder %s25, 0
      %p130 = por %p128, %p129
      %p131 = scmp.ne.s32.totalorder %s119, %s120
      %p132 = scmp.eq.s32.totalorder %s26, 1
      %p133 = por %p131, %p132
      %p135 = scmp.ne.s32.totalorder %s120, %s134
      %p136 = scmp.eq.s32.totalorder %s26, 0
      %p137 = por %p135, %p136
      %s139 = sadd.s32 %s138, 1
      %p142 = scmp.eq.s32.totalorder %s20, 1
      %p143 = scmp.ne.s32.totalorder %s138, %s140
      %p144 = scmp.eq.s32.totalorder %s20, 0
      %p145 = por %p143, %p144
      %p146 = scmp.ne.s32.totalorder %s138, %s140
      %p147 = scmp.eq.s32.totalorder %s25, 1
      %p148 = por %p146, %p147
      %p149 = scmp.ne.s32.totalorder %s140, %s141
      %p150 = scmp.eq.s32.totalorder %s25, 0
      %p151 = por %p149, %p150
      %p152 = scmp.ne.s32.totalorder %s140, %s141
      %p153 = scmp.eq.s32.totalorder %s26, 1
      %p154 = por %p152, %p153
      %p156 = scmp.ne.s32.totalorder %s141, %s155
      %p157 = scmp.eq.s32.totalorder %s26, 0
      %p158 = por %p156, %p157
      %s160 = sadd.s32 %s159, 1
      %p163 = scmp.eq.s32.totalorder %s20, 1
      %p164 = scmp.ne.s32.totalorder %s159, %s161
      %p165 = scmp.eq.s32.totalorder %s20, 0
      %p166 = por %p164, %p165
      %p167 = scmp.ne.s32.totalorder %s159, %s161
      %p168 = scmp.eq.s32.totalorder %s25, 1
      %p169 = por %p167, %p168
      %p170 = scmp.ne.s32.totalorder %s161, %s162
      %p171 = scmp.eq.s32.totalorder %s25, 0
      %p172 = por %p170, %p171
      %p173 = scmp.ne.s32.totalorder %s161, %s162
      %p174 = scmp.eq.s32.totalorder %s26, 1
      %p175 = por %p173, %p174
      %p177 = scmp.ne.s32.totalorder %s162, %s176
      %p178 = scmp.eq.s32.totalorder %s26, 0
      %p179 = por %p177, %p178
      %s181 = sadd.s32 %s180, 1
      %p184 = scmp.eq.s32.totalorder %s20, 1
      %p185 = scmp.ne.s32.totalorder %s180, %s182
      %p186 = scmp.eq.s32.totalorder %s20, 0
      %p187 = por %p185, %p186
      %p188 = scmp.ne.s32.totalorder %s180, %s182
      %p189 = scmp.eq.s32.totalorder %s25, 1
      %p190 = por %p188, %p189
      %p191 = scmp.ne.s32.totalorder %s182, %s183
      %p192 = scmp.eq.s32.totalorder %s25, 0
      %p193 = por %p191, %p192
      %p194 = scmp.ne.s32.totalorder %s182, %s183
      %p195 = scmp.eq.s32.totalorder %s26, 1
      %p196 = por %p194, %p195
      %p198 = scmp.ne.s32.totalorder %s183, %s197
      %p199 = scmp.eq.s32.totalorder %s26, 0
      %p200 = por %p198, %p199
      %s202 = sadd.s32 %s201, 1
      %p205 = scmp.eq.s32.totalorder %s20, 1
      %p206 = scmp.ne.s32.totalorder %s201, %s203
      %p207 = scmp.eq.s32.totalorder %s20, 0
      %p208 = por %p206, %p207
      %p209 = scmp.ne.s32.totalorder %s201, %s203
      %p210 = scmp.eq.s32.totalorder %s25, 1
      %p211 = por %p209, %p210
      %p212 = scmp.ne.s32.totalorder %s203, %s204
      %p213 = scmp.eq.s32.totalorder %s25, 0
      %p214 = por %p212, %p213
      %p215 = scmp.ne.s32.totalorder %s203, %s204
      %p216 = scmp.eq.s32.totalorder %s26, 1
      %p217 = por %p215, %p216
      %p219 = scmp.ne.s32.totalorder %s204, %s218
      %p220 = scmp.eq.s32.totalorder %s26, 0
      %p221 = por %p219, %p220
      %s223 = sadd.s32 %s222, 1
      %p226 = scmp.eq.s32.totalorder %s20, 1
      %p227 = scmp.ne.s32.totalorder %s222, %s224
      %p228 = scmp.eq.s32.totalorder %s20, 0
      %p229 = por %p227, %p228
      %p230 = scmp.ne.s32.totalorder %s222, %s224
      %p231 = scmp.eq.s32.totalorder %s25, 1
      %p232 = por %p230, %p231
      %p233 = scmp.ne.s32.totalorder %s224, %s225
      %p234 = scmp.eq.s32.totalorder %s25, 0
      %p235 = por %p233, %p234
      %p236 = scmp.ne.s32.totalorder %s224, %s225
      %p237 = scmp.eq.s32.totalorder %s26, 1
      %p238 = por %p236, %p237
      %p240 = scmp.ne.s32.totalorder %s225, %s239
      %p241 = scmp.eq.s32.totalorder %s26, 0
      %p242 = por %p240, %p241
      %s244 = sadd.s32 %s243, 1
      %p247 = scmp.eq.s32.totalorder %s20, 1
      %p248 = scmp.ne.s32.totalorder %s243, %s245
      %p249 = scmp.eq.s32.totalorder %s20, 0
      %p250 = por %p248, %p249
      %p251 = scmp.ne.s32.totalorder %s243, %s245
      %p252 = scmp.eq.s32.totalorder %s25, 1
      %p253 = por %p251, %p252
      %p254 = scmp.ne.s32.totalorder %s245, %s246
      %p255 = scmp.eq.s32.totalorder %s25, 0
      %p256 = por %p254, %p255
      %p257 = scmp.ne.s32.totalorder %s245, %s246
      %p258 = scmp.eq.s32.totalorder %s26, 1
      %p259 = por %p257, %p258
      %p261 = scmp.ne.s32.totalorder %s246, %s260
      %p262 = scmp.eq.s32.totalorder %s26, 0
      %p263 = por %p261, %p262
      %s264 = ssub.s32 %s20, %s27
      %p265 = scmp.eq.s32.totalorder %s264, 0
      %s267 = sadd.s32 %s266, 1
      %s268 = scalar_select %p265, %s266, %s267
      %p271 = pneg %p265
      %p272 = scmp.eq.s32.totalorder %s20, 1
      %p273 = por %p271, %p272
      %p274 = scmp.ne.s32.totalorder %s266, %s269
      %p275 = scmp.eq.s32.totalorder %s20, 0
      %p276 = por %p274, %p275
      %p277 = scmp.ne.s32.totalorder %s266, %s269
      %p278 = scmp.eq.s32.totalorder %s25, 1
      %p279 = por %p277, %p278
      %p280 = scmp.ne.s32.totalorder %s269, %s270
      %p281 = scmp.eq.s32.totalorder %s25, 0
      %p282 = por %p280, %p281
      %p283 = scmp.ne.s32.totalorder %s269, %s270
      %p284 = scmp.eq.s32.totalorder %s26, 1
      %p285 = por %p283, %p284
      %p287 = scmp.ne.s32.totalorder %s270, %s286
      %p288 = scmp.eq.s32.totalorder %s26, 0
      %p289 = por %p287, %p288
      %p290 = scmp.le.s32.totalorder 1, %s20
      %p291 = scmp.lt.s32.totalorder %s20, 3
      %p292 = pnand %p290, %p291
      %p293 = pneg %p292
      // Predicated region
      $region9: #{_lambda_.1} parent=5 // pred_check
        _
      $region10: #{_lambda_.1} parent=5 // pred_check_branch
        %295 = sbr.rel (%p292) target = $region12
      $region11: #{_lambda_.1} parent=5 // pred_region
        %s296 = ssub.s32 %s20, 1
        // Predicated region
        $region13: #{_lambda_.1} parent=11 // pred_check
          %p297 = pneg %p67
        $region14: #{_lambda_.1} parent=11 // pred_check_branch
          %299 = sbr.rel (%p297) target = $region16
        $region15: #{_lambda_.1} parent=11 // pred_region
          _
        $region16: #{_lambda_.1} parent=11 // pred_fallthru
          _
        // Predicated region
        $region17: #{_lambda_.1} parent=11 // pred_check
          %p300 = pneg %p88
        $region18: #{_lambda_.1} parent=11 // pred_check_branch
          %302 = sbr.rel (%p300) target = $region20
        $region19: #{_lambda_.1} parent=11 // pred_region
          _
        $region20: #{_lambda_.1} parent=11 // pred_fallthru
          _
        // Predicated region
        $region21: #{_lambda_.1} parent=11 // pred_check
          %p303 = pneg %p109
        $region22: #{_lambda_.1} parent=11 // pred_check_branch
          %305 = sbr.rel (%p303) target = $region24
        $region23: #{_lambda_.1} parent=11 // pred_region
          _
        $region24: #{_lambda_.1} parent=11 // pred_fallthru
          _
        // Predicated region
        $region25: #{_lambda_.1} parent=11 // pred_check
          %p306 = pneg %p130
        $region26: #{_lambda_.1} parent=11 // pred_check_branch
          %308 = sbr.rel (%p306) target = $region28
        $region27: #{_lambda_.1} parent=11 // pred_region
          _
        $region28: #{_lambda_.1} parent=11 // pred_fallthru
          _
        // Predicated region
        $region29: #{_lambda_.1} parent=11 // pred_check
          %p309 = pneg %p151
        $region30: #{_lambda_.1} parent=11 // pred_check_branch
          %311 = sbr.rel (%p309) target = $region32
        $region31: #{_lambda_.1} parent=11 // pred_region
          _
        $region32: #{_lambda_.1} parent=11 // pred_fallthru
          _
        // Predicated region
        $region33: #{_lambda_.1} parent=11 // pred_check
          %p312 = pneg %p172
        $region34: #{_lambda_.1} parent=11 // pred_check_branch
          %314 = sbr.rel (%p312) target = $region36
        $region35: #{_lambda_.1} parent=11 // pred_region
          _
        $region36: #{_lambda_.1} parent=11 // pred_fallthru
          _
        // Predicated region
        $region37: #{_lambda_.1} parent=11 // pred_check
          %p315 = pneg %p193
        $region38: #{_lambda_.1} parent=11 // pred_check_branch
          %317 = sbr.rel (%p315) target = $region40
        $region39: #{_lambda_.1} parent=11 // pred_region
          _
        $region40: #{_lambda_.1} parent=11 // pred_fallthru
          _
        // Predicated region
        $region41: #{_lambda_.1} parent=11 // pred_check
          %p318 = pneg %p214
        $region42: #{_lambda_.1} parent=11 // pred_check_branch
          %320 = sbr.rel (%p318) target = $region44
        $region43: #{_lambda_.1} parent=11 // pred_region
          _
        $region44: #{_lambda_.1} parent=11 // pred_fallthru
          _
        // Predicated region
        $region45: #{_lambda_.1} parent=11 // pred_check
          %p321 = pneg %p235
        $region46: #{_lambda_.1} parent=11 // pred_check_branch
          %323 = sbr.rel (%p321) target = $region48
        $region47: #{_lambda_.1} parent=11 // pred_region
          _
        $region48: #{_lambda_.1} parent=11 // pred_fallthru
          _
        // Predicated region
        $region49: #{_lambda_.1} parent=11 // pred_check
          %p324 = pneg %p256
        $region50: #{_lambda_.1} parent=11 // pred_check_branch
          %326 = sbr.rel (%p324) target = $region52
        $region51: #{_lambda_.1} parent=11 // pred_region
          _
        $region52: #{_lambda_.1} parent=11 // pred_fallthru
          _
      $region12: #{_lambda_.1} parent=5 // pred_fallthru
        _
      %p327 = scmp.lt.s32.totalorder %s20, 2
      // Predicated region
      $region53: #{_lambda_.1} parent=5 // pred_check
        %p328 = pneg %p327
      $region54: #{_lambda_.1} parent=5 // pred_check_branch
        %330 = sbr.rel (%p328) target = $region56
      $region55: #{_lambda_.1} parent=5 // pred_region
        // Predicated region
        $region57: #{_lambda_.1} parent=55 // pred_check
          %p331 = pneg %p40
        $region58: #{_lambda_.1} parent=55 // pred_check_branch
          %333 = sbr.rel (%p331) target = $region60
        $region59: #{_lambda_.1} parent=55 // pred_region
          %p334 = scmp.lt.s32.totalorder %s20, 1
          %s335 = scalar_select %p334, %s20, 1
          %s336 = smul.addr %s335, 9
          %s337 = smul.addr %s336, 8
          %s338 = scalar_lea.vmem %s0, %s337
        $region60: #{_lambda_.1} parent=55 // pred_fallthru
          _
      $region56: #{_lambda_.1} parent=5 // pred_fallthru
        _
      %p339 = scmp.le.s32.totalorder 1, %s20
      %p340 = scmp.lt.s32.totalorder %s20, 3
      %p341 = pnand %p339, %p340
      %p342 = pneg %p341
      // Predicated region
      $region61: #{_lambda_.1} parent=5 // pred_check
        _
      $region62: #{_lambda_.1} parent=5 // pred_check_branch
        %344 = sbr.rel (%p341) target = $region64
      $region63: #{_lambda_.1} parent=5 // pred_region
        %s345 = ssub.s32 %s20, 1
        %p346 = scmp.lt.s32.totalorder %s25, 1
        %s347 = scalar_select %p346, %s25, 1
        %s348 = smul.addr %s347, 9
        %s349 = smul.addr %s348, 8
        %s350 = scalar_lea.vmem %s0, %s349
        %p351 = pneg %p46
        %p352 = pneg %p43
        %p353 = pneg %p67
        %p354 = pneg %p64
        %p355 = pneg %p88
        %p356 = pneg %p85
        %p357 = pneg %p109
        %p358 = pneg %p106
        %p359 = pneg %p130
        %p360 = pneg %p127
        %p361 = pneg %p151
        %p362 = pneg %p148
        %p363 = pneg %p172
        %p364 = pneg %p169
        %p365 = pneg %p193
        %p366 = pneg %p190
        %p367 = pneg %p214
        %p368 = pneg %p211
        %p369 = pneg %p235
        %p370 = pneg %p232
        %p371 = pneg %p256
        %p372 = pneg %p253
        %p373 = pneg %p282
        %p374 = pneg %p279
        %s375 = sand.u32 %s269, 1
        %s376 = scalar_lea.sflag [#allocation5], %s375
        %s377 = sand.u32 %s269, 1
        %s378 = scalar_lea.vmem [#allocation4], %s377
        %p379 = scmp.lt.s32.totalorder %s25, 1
        %s380 = scalar_select %p379, %s25, 1
        %s381 = smul.addr %s380, 9
        %s382 = smul.addr %s381, 8
        %s383 = scalar_lea.vmem %s0, %s382
        %385 = vst [vmem:[#allocation2] sm:$0xff] 0.0
        %386 = vst [vmem:[#allocation2 + $0x8] sm:$0xff] 0.0
        %387 = vst [vmem:[#allocation2 + $0x10] sm:$0x3] 0.0
        %388 = vst [vmem:[#allocation3] sm:$0x3f] 0.0
        %v389 = vld [vmem:[%s383] sm:$0xff]
        %v390 = vld [vmem:[%s383 + $0x8] sm:$0xff]
        %v391 = vld [vmem:[%s383 + $0x10] sm:$0xff]
        %v392 = vld [vmem:[%s383 + $0x18] sm:$0xff]
        %v393 = vld [vmem:[%s383 + $0x20] sm:$0xff]
        %v394 = vld [vmem:[%s383 + $0x28] sm:$0xff]
        %v395 = vld [vmem:[%s383 + $0x30] sm:$0xff]
        %v396 = vld [vmem:[%s383 + $0x38] sm:$0xff]
        %v397 = vld [vmem:[%s383 + $0x40] sm:$0x3]
        %v398 = vpack.c.bf16 %v390, %v389
        %v399 = vpack.c.bf16 %v392, %v391
        %v400 = vpack.c.bf16 %v394, %v393
        %v401 = vpack.c.bf16 %v396, %v395
        %v402 = vld [vmem:[%s1] sm:$0xf]
        %v403 = vld [vmem:[%s1 + $0x4] sm:$0xf]
        %v404 = vld [vmem:[%s1 + $0x8] sm:$0xf]
        %v405 = vld [vmem:[%s1 + $0xc] sm:$0xf]
        %v406 = vld [vmem:[%s1 + $0x10] sm:$0xf]
        %v407 = vld [vmem:[%s1 + $0x14] sm:$0xf]
        %v408 = vld [vmem:[%s1 + $0x18] sm:$0xf]
        %v409 = vld [vmem:[%s1 + $0x1c] sm:$0xf]
        %v410 = vld [vmem:[%s1 + $0x20] sm:$0xf]
        %v411 = vld [vmem:[%s1 + $0x24] sm:$0xf]
        %v412 = vld [vmem:[%s1 + $0x28] sm:$0xf]
        %v413 = vld [vmem:[%s1 + $0x2c] sm:$0xf]
        %v414 = vld [vmem:[%s1 + $0x30] sm:$0xf]
        %v415 = vld [vmem:[%s1 + $0x34] sm:$0xf]
        %v416 = vld [vmem:[%s1 + $0x38] sm:$0xf]
        %v417 = vld [vmem:[%s1 + $0x3c] sm:$0xf]
        %v418 = vpack.c.bf16 %v397, %v397
        %s419 = scalar_lea.vmem %s1, 64
        %v420 = vld [vmem:[%s419] sm:$0xf]
        %v421 = vld [vmem:[%s419 + $0x4] sm:$0xf]
        %v422 = vld [vmem:[%s419 + $0x8] sm:$0xf]
        %v423 = vld [vmem:[%s419 + $0xc] sm:$0xf]
        %v424 = vld [vmem:[%s419 + $0x10] sm:$0xf]
        %v425 = vld [vmem:[%s419 + $0x14] sm:$0xf]
        %v426 = vld [vmem:[%s419 + $0x18] sm:$0xf]
        %v427 = vld [vmem:[%s419 + $0x1c] sm:$0xf]
        %v428 = vld [vmem:[%s419 + $0x20] sm:$0xf]
        %v429 = vld [vmem:[%s419 + $0x24] sm:$0xf]
        %v430 = vld [vmem:[%s419 + $0x28] sm:$0xf]
        %v431 = vld [vmem:[%s419 + $0x2c] sm:$0xf]
        %v432 = vld [vmem:[%s419 + $0x30] sm:$0xf]
        %v433 = vld [vmem:[%s419 + $0x34] sm:$0xf]
        %v434 = vld [vmem:[%s419 + $0x38] sm:$0xf]
        %v435 = vld [vmem:[%s419 + $0x3c] sm:$0xf]
        %vm436 = vsmask.f32 7424
        %v438 = vshrl.u32 %v398, 16
        %v440 = vshll.u32 %v398, 16
        %v442 = vrot.slane %v440, 1
        %v443 = vor.u32 %v438, %v442
        %v445 = vshll.u32 %v399, 16
        %v447 = vrot.slane %v445, 1
        %v448 = vsel %vm436, %v443, %v447
        %v449 = vshrl.u32 %v399, 16
        %v451 = vor.u32 %v449, %v447
        %v453 = vshll.u32 %v400, 16
        %v455 = vrot.slane %v453, 1
        %v456 = vsel %vm436, %v451, %v455
        %v457 = vshrl.u32 %v400, 16
        %v459 = vor.u32 %v457, %v455
        %v461 = vshll.u32 %v401, 16
        %v463 = vrot.slane %v461, 1
        %v464 = vsel %vm436, %v459, %v463
        %v465 = vshrl.u32 %v401, 16
        %v467 = vor.u32 %v465, %v463
        %v469 = vshll.u32 %v418, 16
        %v471 = vrot.slane %v469, 1
        %v472 = vsel %vm436, %v467, %v471
        %v493 = vunpack.c.l.b16 %v420
        %v494 = vunpack.c.l.b16 %v421
        %v495 = vunpack.c.l.b16 %v422
        %v496 = vunpack.c.l.b16 %v423
        %v497 = vunpack.c.l.b16 %v424
        %v498 = vunpack.c.l.b16 %v425
        %v499 = vunpack.c.l.b16 %v426
        %v500 = vunpack.c.l.b16 %v427
        %v501 = vunpack.c.l.b16 %v428
        %v502 = vunpack.c.l.b16 %v429
        %v503 = vunpack.c.l.b16 %v430
        %v504 = vunpack.c.l.b16 %v431
        %v505 = vunpack.c.l.b16 %v432
        %v506 = vunpack.c.l.b16 %v433
        %v507 = vunpack.c.l.b16 %v434
        %v508 = vunpack.c.l.b16 %v435
        %v509 = vpack.c.b16 %v494, %v493
        %v510 = vpack.c.b16 %v496, %v495
        %v511 = vpack.c.b16 %v498, %v497
        %v512 = vpack.c.b16 %v500, %v499
        %v513 = vpack.c.b16 %v502, %v501
        %v514 = vpack.c.b16 %v504, %v503
        %v515 = vpack.c.b16 %v506, %v505
        %v516 = vpack.c.b16 %v508, %v507
        %525 = vmatprep.subr.bf16.mxu0 0
        %526 = vmatpush1.bf16.msra.mxu0 %v509
        %527 = vmatprep.subr.bf16.mxu0 0
        %528 = vmatpush1.bf16.msra.mxu0 %v510
        %529 = vmatprep.subr.bf16.mxu0 0
        %530 = vmatpush1.bf16.msra.mxu0 %v511
        %531 = vmatprep.subr.bf16.mxu0 0
        %532 = vmatpush1.bf16.msra.mxu0 %v512
        %533 = vmatprep.subr.bf16.mxu0 0
        %534 = vmatpush1.bf16.msra.mxu0 %v513
        %535 = vmatprep.subr.bf16.mxu0 0
        %536 = vmatpush1.bf16.msra.mxu0 %v514
        %537 = vmatprep.subr.bf16.mxu0 0
        %538 = vmatpush1.bf16.msra.mxu0 %v515
        %539 = vmatprep.subr.bf16.mxu0 0
        %540 = vmatpush1.bf16.msra.mxu0 %v516
        %541 = vmatprep.subr.bf16.mxu0 0
        %542 = vmatpush1.bf16.msra.mxu0 0
        %543 = vmatprep.subr.bf16.mxu0 0
        %544 = vmatpush1.bf16.msra.mxu0 0
        %545 = vmatprep.subr.bf16.mxu0 0
        %546 = vmatpush1.bf16.msra.mxu0 0
        %547 = vmatprep.subr.bf16.mxu0 0
        %548 = vmatpush1.bf16.msra.mxu0 0
        %549 = vmatprep.subr.bf16.mxu0 0
        %550 = vmatpush1.bf16.msra.mxu0 0
        %551 = vmatprep.subr.bf16.mxu0 0
        %552 = vmatpush1.bf16.msra.mxu0 0
        %553 = vmatprep.subr.bf16.mxu0 0
        %554 = vmatpush1.bf16.msra.mxu0 0
        %555 = vmatprep.subr.bf16.mxu0 0
        %556 = vmatpush1.bf16.msra.mxu0 0
        %557 = vmatprep.mubr.bf16.mxu0 0
        %558 = vmatmul.mubr.bf16.gmra.mrb[0].mxu0 %v448
        %v559 = vpop.f32.mrb[0].mxu0
        %v560 = vadd.f32 0.0, %v559
        %v561 = vpop.f32.mrb[0].mxu0
        %v562 = vpop.f32.mrb[0].mxu0
        %v563 = vadd.f32 0.0, %v562
        %v564 = vpop.f32.mrb[0].mxu0
        %565 = vmatprep.mubr.bf16.mxu0 0
        %566 = vmatmul.mubr.bf16.gmra.mrb[0].mxu0 %v456
        %v567 = vpop.f32.mrb[0].mxu0
        %v568 = vadd.f32 0.0, %v567
        %v569 = vpop.f32.mrb[0].mxu0
        %v570 = vpop.f32.mrb[0].mxu0
        %v571 = vadd.f32 0.0, %v570
        %v572 = vpop.f32.mrb[0].mxu0
        %573 = vmatprep.mubr.bf16.mxu0 0
        %574 = vmatmul.mubr.bf16.gmra.mrb[0].mxu0 %v464
        %v575 = vpop.f32.mrb[0].mxu0
        %v576 = vadd.f32 0.0, %v575
        %v577 = vpop.f32.mrb[0].mxu0
        %v578 = vpop.f32.mrb[0].mxu0
        %v579 = vadd.f32 0.0, %v578
        %v580 = vpop.f32.mrb[0].mxu0
        %581 = vmatprep.mubr.bf16.mxu0 0
        %582 = vmatmul.mubr.bf16.gmra.mrb[0].mxu0 %v472
        %v583 = vpop.f32.mrb[0].mxu0
        %v584 = vadd.f32 0.0, %v583
        %v585 = vpop.f32.mrb[0].mxu0
        %v586 = vpop.f32.mrb[0].mxu0
        %v587 = vadd.f32 0.0, %v586
        %v588 = vpop.f32.mrb[0].mxu0
        %589 = vdwg.mxu0
        %v606 = vunpack.c.l.b16 %v402
        %v607 = vunpack.c.l.b16 %v403
        %v608 = vunpack.c.l.b16 %v404
        %v609 = vunpack.c.l.b16 %v405
        %v610 = vunpack.c.l.b16 %v406
        %v611 = vunpack.c.l.b16 %v407
        %v612 = vunpack.c.l.b16 %v408
        %v613 = vunpack.c.l.b16 %v409
        %v614 = vunpack.c.l.b16 %v410
        %v615 = vunpack.c.l.b16 %v411
        %v616 = vunpack.c.l.b16 %v412
        %v617 = vunpack.c.l.b16 %v413
        %v618 = vunpack.c.l.b16 %v414
        %v619 = vunpack.c.l.b16 %v415
        %v620 = vunpack.c.l.b16 %v416
        %v621 = vunpack.c.l.b16 %v417
        %v622 = vpack.c.b16 %v607, %v606
        %v623 = vpack.c.b16 %v609, %v608
        %v624 = vpack.c.b16 %v611, %v610
        %v625 = vpack.c.b16 %v613, %v612
        %v626 = vpack.c.b16 %v615, %v614
        %v627 = vpack.c.b16 %v617, %v616
        %v628 = vpack.c.b16 %v619, %v618
        %v629 = vpack.c.b16 %v621, %v620
        %638 = vmatprep.subr.bf16.mxu0 0
        %639 = vmatpush1.bf16.msra.mxu0 %v622
        %640 = vmatprep.subr.bf16.mxu0 0
        %641 = vmatpush1.bf16.msra.mxu0 %v623
        %642 = vmatprep.subr.bf16.mxu0 0
        %643 = vmatpush1.bf16.msra.mxu0 %v624
        %644 = vmatprep.subr.bf16.mxu0 0
        %645 = vmatpush1.bf16.msra.mxu0 %v625
        %646 = vmatprep.subr.bf16.mxu0 0
        %647 = vmatpush1.bf16.msra.mxu0 %v626
        %648 = vmatprep.subr.bf16.mxu0 0
        %649 = vmatpush1.bf16.msra.mxu0 %v627
        %650 = vmatprep.subr.bf16.mxu0 0
        %651 = vmatpush1.bf16.msra.mxu0 %v628
        %652 = vmatprep.subr.bf16.mxu0 0
        %653 = vmatpush1.bf16.msra.mxu0 %v629
        %654 = vmatprep.subr.bf16.mxu0 0
        %655 = vmatpush1.bf16.msra.mxu0 0
        %656 = vmatprep.subr.bf16.mxu0 0
        %657 = vmatpush1.bf16.msra.mxu0 0
        %658 = vmatprep.subr.bf16.mxu0 0
        %659 = vmatpush1.bf16.msra.mxu0 0
        %660 = vmatprep.subr.bf16.mxu0 0
        %661 = vmatpush1.bf16.msra.mxu0 0
        %662 = vmatprep.subr.bf16.mxu0 0
        %663 = vmatpush1.bf16.msra.mxu0 0
        %664 = vmatprep.subr.bf16.mxu0 0
        %665 = vmatpush1.bf16.msra.mxu0 0
        %666 = vmatprep.subr.bf16.mxu0 0
        %667 = vmatpush1.bf16.msra.mxu0 0
        %668 = vmatprep.subr.bf16.mxu0 0
        %669 = vmatpush1.bf16.msra.mxu0 0
        %670 = vmatprep.mubr.bf16.mxu0 0
        %671 = vmatmul.mubr.bf16.gmra.mrb[0].mxu0 %v398
        %v672 = vpop.f32.mrb[0].mxu0
        %v673 = vadd.f32 %v560, %v672
        %v674 = vpop.f32.mrb[0].mxu0
        %v675 = vpop.f32.mrb[0].mxu0
        %v676 = vadd.f32 %v563, %v675
        %v677 = vpop.f32.mrb[0].mxu0
        %678 = vmatprep.mubr.bf16.mxu0 0
        %679 = vmatmul.mubr.bf16.gmra.mrb[0].mxu0 %v399
        %v680 = vpop.f32.mrb[0].mxu0
        %v681 = vadd.f32 %v568, %v680
        %v682 = vpop.f32.mrb[0].mxu0
        %v683 = vpop.f32.mrb[0].mxu0
        %v684 = vadd.f32 %v571, %v683
        %v685 = vpop.f32.mrb[0].mxu0
        %686 = vmatprep.mubr.bf16.mxu0 0
        %687 = vmatmul.mubr.bf16.gmra.mrb[0].mxu0 %v400
        %v688 = vpop.f32.mrb[0].mxu0
        %v689 = vadd.f32 %v576, %v688
        %v690 = vpop.f32.mrb[0].mxu0
        %v691 = vpop.f32.mrb[0].mxu0
        %v692 = vadd.f32 %v579, %v691
        %v693 = vpop.f32.mrb[0].mxu0
        %694 = vmatprep.mubr.bf16.mxu0 0
        %695 = vmatmul.mubr.bf16.gmra.mrb[0].mxu0 %v401
        %v696 = vpop.f32.mrb[0].mxu0
        %v697 = vadd.f32 %v584, %v696
        %v698 = vpop.f32.mrb[0].mxu0
        %v699 = vpop.f32.mrb[0].mxu0
        %v700 = vadd.f32 %v587, %v699
        %v701 = vpop.f32.mrb[0].mxu0
        %702 = vdwg.mxu0
        %s703 = scalar_lea.vmem %s1, 128
        %v704 = vld [vmem:[%s703] sm:$0xf]
        %v705 = vld [vmem:[%s703 + $0x4] sm:$0xf]
        %v706 = vld [vmem:[%s703 + $0x8] sm:$0xf]
        %v707 = vld [vmem:[%s703 + $0xc] sm:$0xf]
        %v708 = vld [vmem:[%s703 + $0x10] sm:$0xf]
        %v709 = vld [vmem:[%s703 + $0x14] sm:$0xf]
        %v710 = vld [vmem:[%s703 + $0x18] sm:$0xf]
        %v711 = vld [vmem:[%s703 + $0x1c] sm:$0xf]
        %v712 = vld [vmem:[%s703 + $0x20] sm:$0xf]
        %v713 = vld [vmem:[%s703 + $0x24] sm:$0xf]
        %v714 = vld [vmem:[%s703 + $0x28] sm:$0xf]
        %v715 = vld [vmem:[%s703 + $0x2c] sm:$0xf]
        %v716 = vld [vmem:[%s703 + $0x30] sm:$0xf]
        %v717 = vld [vmem:[%s703 + $0x34] sm:$0xf]
        %v718 = vld [vmem:[%s703 + $0x38] sm:$0xf]
        %v719 = vld [vmem:[%s703 + $0x3c] sm:$0xf]
        %vm725 = vcmask 1046528
        %v726 = vrot.slane %v398, 1
        %v727 = vrot.slane %v399, 1
        %v728 = vsel %vm725, %v726, %v727
        %v729 = vrot.slane %v400, 1
        %v730 = vsel %vm725, %v727, %v729
        %v731 = vrot.slane %v401, 1
        %v732 = vsel %vm725, %v729, %v731
        %v733 = vrot.slane %v418, 1
        %v734 = vsel %vm725, %v731, %v733
        %v755 = vunpack.c.l.b16 %v704
        %v756 = vunpack.c.l.b16 %v705
        %v757 = vunpack.c.l.b16 %v706
        %v758 = vunpack.c.l.b16 %v707
        %v759 = vunpack.c.l.b16 %v708
        %v760 = vunpack.c.l.b16 %v709
        %v761 = vunpack.c.l.b16 %v710
        %v762 = vunpack.c.l.b16 %v711
        %v763 = vunpack.c.l.b16 %v712
        %v764 = vunpack.c.l.b16 %v713
        %v765 = vunpack.c.l.b16 %v714
        %v766 = vunpack.c.l.b16 %v715
        %v767 = vunpack.c.l.b16 %v716
        %v768 = vunpack.c.l.b16 %v717
        %v769 = vunpack.c.l.b16 %v718
        %v770 = vunpack.c.l.b16 %v719
        %v771 = vpack.c.b16 %v756, %v755
        %v772 = vpack.c.b16 %v758, %v757
        %v773 = vpack.c.b16 %v760, %v759
        %v774 = vpack.c.b16 %v762, %v761
        %v775 = vpack.c.b16 %v764, %v763
        %v776 = vpack.c.b16 %v766, %v765
        %v777 = vpack.c.b16 %v768, %v767
        %v778 = vpack.c.b16 %v770, %v769
        %787 = vmatprep.subr.bf16.mxu0 0
        %788 = vmatpush1.bf16.msra.mxu0 %v771
        %789 = vmatprep.subr.bf16.mxu0 0
        %790 = vmatpush1.bf16.msra.mxu0 %v772
        %791 = vmatprep.subr.bf16.mxu0 0
        %792 = vmatpush1.bf16.msra.mxu0 %v773
        %793 = vmatprep.subr.bf16.mxu0 0
        %794 = vmatpush1.bf16.msra.mxu0 %v774
        %795 = vmatprep.subr.bf16.mxu0 0
        %796 = vmatpush1.bf16.msra.mxu0 %v775
        %797 = vmatprep.subr.bf16.mxu0 0
        %798 = vmatpush1.bf16.msra.mxu0 %v776
        %799 = vmatprep.subr.bf16.mxu0 0
        %800 = vmatpush1.bf16.msra.mxu0 %v777
        %801 = vmatprep.subr.bf16.mxu0 0
        %802 = vmatpush1.bf16.msra.mxu0 %v778
        %803 = vmatprep.subr.bf16.mxu0 0
        %804 = vmatpush1.bf16.msra.mxu0 0
        %805 = vmatprep.subr.bf16.mxu0 0
        %806 = vmatpush1.bf16.msra.mxu0 0
        %807 = vmatprep.subr.bf16.mxu0 0
        %808 = vmatpush1.bf16.msra.mxu0 0
        %809 = vmatprep.subr.bf16.mxu0 0
        %810 = vmatpush1.bf16.msra.mxu0 0
        %811 = vmatprep.subr.bf16.mxu0 0
        %812 = vmatpush1.bf16.msra.mxu0 0
        %813 = vmatprep.subr.bf16.mxu0 0
        %814 = vmatpush1.bf16.msra.mxu0 0
        %815 = vmatprep.subr.bf16.mxu0 0
        %816 = vmatpush1.bf16.msra.mxu0 0
        %817 = vmatprep.subr.bf16.mxu0 0
        %818 = vmatpush1.bf16.msra.mxu0 0
        %819 = vmatprep.mubr.bf16.mxu0 0
        %820 = vmatmul.mubr.bf16.gmra.mrb[0].mxu0 %v728
        %v821 = vpop.f32.mrb[0].mxu0
        %v822 = vadd.f32 0.0, %v821
        %v823 = vpop.f32.mrb[0].mxu0
        %v824 = vpop.f32.mrb[0].mxu0
        %v825 = vadd.f32 0.0, %v824
        %v826 = vpop.f32.mrb[0].mxu0
        %827 = vmatprep.mubr.bf16.mxu0 0
        %828 = vmatmul.mubr.bf16.gmra.mrb[0].mxu0 %v730
        %v829 = vpop.f32.mrb[0].mxu0
        %v830 = vadd.f32 0.0, %v829
        %v831 = vpop.f32.mrb[0].mxu0
        %v832 = vpop.f32.mrb[0].mxu0
        %v833 = vadd.f32 0.0, %v832
        %v834 = vpop.f32.mrb[0].mxu0
        %835 = vmatprep.mubr.bf16.mxu0 0
        %836 = vmatmul.mubr.bf16.gmra.mrb[0].mxu0 %v732
        %v837 = vpop.f32.mrb[0].mxu0
        %v838 = vadd.f32 0.0, %v837
        %v839 = vpop.f32.mrb[0].mxu0
        %v840 = vpop.f32.mrb[0].mxu0
        %v841 = vadd.f32 0.0, %v840
        %v842 = vpop.f32.mrb[0].mxu0
        %843 = vmatprep.mubr.bf16.mxu0 0
        %844 = vmatmul.mubr.bf16.gmra.mrb[0].mxu0 %v734
        %v845 = vpop.f32.mrb[0].mxu0
        %v846 = vadd.f32 0.0, %v845
        %v847 = vpop.f32.mrb[0].mxu0
        %v848 = vpop.f32.mrb[0].mxu0
        %v849 = vadd.f32 0.0, %v848
        %v850 = vpop.f32.mrb[0].mxu0
        %851 = vdwg.mxu0
        %v852 = vadd.f32 %v673, %v822
        %v853 = vadd.f32 %v676, %v825
        %v854 = vadd.f32 %v681, %v830
        %v855 = vadd.f32 %v684, %v833
        %v856 = vadd.f32 %v689, %v838
        %v857 = vadd.f32 %v692, %v841
        %v858 = vadd.f32 %v697, %v846
        %v859 = vadd.f32 %v700, %v849
        %v860 = vld [vmem:[%s2] sm:$0x1]
        %v862 = vlaneseq
        %v863 = vshrl.u32 %v862, 7
        %v864 = vsub.s32 0, %v863
        %v865 = vrot.slane %v860, %v864
        %v867 = vadd.f32 %v852, %v865
        %v868 = vadd.f32 %v853, %v865
        %v869 = vadd.f32 %v854, %v865
        %v870 = vadd.f32 %v855, %v865
        %v871 = vadd.f32 %v856, %v865
        %v872 = vadd.f32 %v857, %v865
        %v873 = vadd.f32 %v858, %v865
        %v874 = vadd.f32 %v859, %v865
        %v875 = vmax.f32 %v867, 0.0
        %v876 = vmax.f32 %v868, 0.0
        %v877 = vmax.f32 %v869, 0.0
        %v878 = vmax.f32 %v870, 0.0
        %v879 = vmax.f32 %v871, 0.0
        %v880 = vmax.f32 %v872, 0.0
        %v881 = vmax.f32 %v873, 0.0
        %v882 = vmax.f32 %v874, 0.0
        %v891 = vcombine.high %v875, %v875
        %v892 = vcombine.high %v876, %v876
        %v893 = vcombine.high %v877, %v877
        %v894 = vcombine.high %v878, %v878
        %v895 = vcombine.high %v879, %v879
        %v896 = vcombine.high %v880, %v880
        %v897 = vcombine.high %v881, %v881
        %v898 = vcombine.high %v882, %v882
        %vm907 = vcmask 1043456
        %v908 = vsel %vm907, %v875, -inf
        %v909 = vrot.slane %v908, 4
        %v910 = vmax.f32 %v908, %v909
        %v911 = vrot.slane %v910, 2
        %v912 = vmax.f32 %v910, %v911
        %v913 = vrot.slane %v912, 1
        %v914 = vmax.f32 %v912, %v913
        %v915 = vsel %vm907, %v891, -inf
        %v916 = vrot.slane %v915, 4
        %v917 = vmax.f32 %v915, %v916
        %v918 = vrot.slane %v917, 2
        %v919 = vmax.f32 %v917, %v918
        %v920 = vrot.slane %v919, 1
        %v921 = vmax.f32 %v919, %v920
        %v922 = vsel %vm907, %v876, -inf
        %v923 = vrot.slane %v922, 4
        %v924 = vmax.f32 %v922, %v923
        %v925 = vrot.slane %v924, 2
        %v926 = vmax.f32 %v924, %v925
        %v927 = vrot.slane %v926, 1
        %v928 = vmax.f32 %v926, %v927
        %v929 = vsel %vm907, %v892, -inf
        %v930 = vrot.slane %v929, 4
        %v931 = vmax.f32 %v929, %v930
        %v932 = vrot.slane %v931, 2
        %v933 = vmax.f32 %v931, %v932
        %v934 = vrot.slane %v933, 1
        %v935 = vmax.f32 %v933, %v934
        %v936 = vsel %vm907, %v877, -inf
        %v937 = vrot.slane %v936, 4
        %v938 = vmax.f32 %v936, %v937
        %v939 = vrot.slane %v938, 2
        %v940 = vmax.f32 %v938, %v939
        %v941 = vrot.slane %v940, 1
        %v942 = vmax.f32 %v940, %v941
        %v943 = vsel %vm907, %v893, -inf
        %v944 = vrot.slane %v943, 4
        %v945 = vmax.f32 %v943, %v944
        %v946 = vrot.slane %v945, 2
        %v947 = vmax.f32 %v945, %v946
        %v948 = vrot.slane %v947, 1
        %v949 = vmax.f32 %v947, %v948
        %v950 = vsel %vm907, %v878, -inf
        %v951 = vrot.slane %v950, 4
        %v952 = vmax.f32 %v950, %v951
        %v953 = vrot.slane %v952, 2
        %v954 = vmax.f32 %v952, %v953
        %v955 = vrot.slane %v954, 1
        %v956 = vmax.f32 %v954, %v955
        %v957 = vsel %vm907, %v894, -inf
        %v958 = vrot.slane %v957, 4
        %v959 = vmax.f32 %v957, %v958
        %v960 = vrot.slane %v959, 2
        %v961 = vmax.f32 %v959, %v960
        %v962 = vrot.slane %v961, 1
        %v963 = vmax.f32 %v961, %v962
        %v964 = vsel %vm907, %v879, -inf
        %v965 = vrot.slane %v964, 4
        %v966 = vmax.f32 %v964, %v965
        %v967 = vrot.slane %v966, 2
        %v968 = vmax.f32 %v966, %v967
        %v969 = vrot.slane %v968, 1
        %v970 = vmax.f32 %v968, %v969
        %v971 = vsel %vm907, %v895, -inf
        %v972 = vrot.slane %v971, 4
        %v973 = vmax.f32 %v971, %v972
        %v974 = vrot.slane %v973, 2
        %v975 = vmax.f32 %v973, %v974
        %v976 = vrot.slane %v975, 1
        %v977 = vmax.f32 %v975, %v976
        %v978 = vsel %vm907, %v880, -inf
        %v979 = vrot.slane %v978, 4
        %v980 = vmax.f32 %v978, %v979
        %v981 = vrot.slane %v980, 2
        %v982 = vmax.f32 %v980, %v981
        %v983 = vrot.slane %v982, 1
        %v984 = vmax.f32 %v982, %v983
        %v985 = vsel %vm907, %v896, -inf
        %v986 = vrot.slane %v985, 4
        %v987 = vmax.f32 %v985, %v986
        %v988 = vrot.slane %v987, 2
        %v989 = vmax.f32 %v987, %v988
        %v990 = vrot.slane %v989, 1
        %v991 = vmax.f32 %v989, %v990
        %v992 = vsel %vm907, %v881, -inf
        %v993 = vrot.slane %v992, 4
        %v994 = vmax.f32 %v992, %v993
        %v995 = vrot.slane %v994, 2
        %v996 = vmax.f32 %v994, %v995
        %v997 = vrot.slane %v996, 1
        %v998 = vmax.f32 %v996, %v997
        %v999 = vsel %vm907, %v897, -inf
        %v1000 = vrot.slane %v999, 4
        %v1001 = vmax.f32 %v999, %v1000
        %v1002 = vrot.slane %v1001, 2
        %v1003 = vmax.f32 %v1001, %v1002
        %v1004 = vrot.slane %v1003, 1
        %v1005 = vmax.f32 %v1003, %v1004
        %v1006 = vsel %vm907, %v882, -inf
        %v1007 = vrot.slane %v1006, 4
        %v1008 = vmax.f32 %v1006, %v1007
        %v1009 = vrot.slane %v1008, 2
        %v1010 = vmax.f32 %v1008, %v1009
        %v1011 = vrot.slane %v1010, 1
        %v1012 = vmax.f32 %v1010, %v1011
        %v1013 = vsel %vm907, %v898, -inf
        %v1014 = vrot.slane %v1013, 4
        %v1015 = vmax.f32 %v1013, %v1014
        %v1016 = vrot.slane %v1015, 2
        %v1017 = vmax.f32 %v1015, %v1016
        %v1018 = vrot.slane %v1017, 1
        %v1019 = vmax.f32 %v1017, %v1018
        %vm1036 = vcmask 1041409
        %v1037 = vsel %vm1036, %v921, %v914
        %vm1038 = vcmask 1042434
        %v1039 = vsel %vm1038, %v928, %v1037
        %vm1040 = vcmask 1043459
        %v1041 = vsel %vm1040, %v935, %v1039
        %vm1042 = vcmask 1044484
        %v1043 = vsel %vm1042, %v942, %v1041
        %vm1044 = vcmask 1045509
        %v1045 = vsel %vm1044, %v949, %v1043
        %vm1046 = vcmask 1046534
        %v1047 = vsel %vm1046, %v956, %v1045
        %vm1048 = vcmask 1047559
        %v1049 = vsel %vm1048, %v963, %v1047
        %v1050 = vsel %vm1036, %v977, %v970
        %v1051 = vsel %vm1038, %v984, %v1050
        %v1052 = vsel %vm1040, %v991, %v1051
        %v1053 = vsel %vm1042, %v998, %v1052
        %v1054 = vsel %vm1044, %v1005, %v1053
        %v1055 = vsel %vm1046, %v1012, %v1054
        %v1056 = vsel %vm1048, %v1019, %v1055
        %1059 = vst [vmem:[#allocation2 + $0x1] sm:$0xff] %v1049
        %1060 = vst [vmem:[#allocation2 + $0x9] sm:$0xff] %v1056
        %v1061 = vld [vmem:[#allocation2] sm:$0xff]
        %v1062 = vld [vmem:[#allocation2 + $0x8] sm:$0xff]
        %v1063 = vld [vmem:[#allocation2 + $0x10] sm:$0x3]
        %v1064 = vpack.c.bf16 %v1062, %v1061
        %v1065 = vld [vmem:[%s3] sm:$0xf]
        %v1066 = vld [vmem:[%s3 + $0x4] sm:$0xf]
        %v1067 = vld [vmem:[%s3 + $0x8] sm:$0xf]
        %v1068 = vld [vmem:[%s3 + $0xc] sm:$0xf]
        %v1069 = vld [vmem:[%s3 + $0x10] sm:$0xf]
        %v1070 = vld [vmem:[%s3 + $0x14] sm:$0xf]
        %v1071 = vld [vmem:[%s3 + $0x18] sm:$0xf]
        %v1072 = vld [vmem:[%s3 + $0x1c] sm:$0xf]
        %v1073 = vld [vmem:[%s3 + $0x20] sm:$0xf]
        %v1074 = vld [vmem:[%s3 + $0x24] sm:$0xf]
        %v1075 = vld [vmem:[%s3 + $0x28] sm:$0xf]
        %v1076 = vld [vmem:[%s3 + $0x2c] sm:$0xf]
        %v1077 = vld [vmem:[%s3 + $0x30] sm:$0xf]
        %v1078 = vld [vmem:[%s3 + $0x34] sm:$0xf]
        %v1079 = vld [vmem:[%s3 + $0x38] sm:$0xf]
        %v1080 = vld [vmem:[%s3 + $0x3c] sm:$0xf]
        %v1081 = vpack.c.bf16 %v1063, %v1063
        %s1082 = scalar_lea.vmem %s3, 64
        %v1083 = vld [vmem:[%s1082] sm:$0xf]
        %v1084 = vld [vmem:[%s1082 + $0x4] sm:$0xf]
        %v1085 = vld [vmem:[%s1082 + $0x8] sm:$0xf]
        %v1086 = vld [vmem:[%s1082 + $0xc] sm:$0xf]
        %v1087 = vld [vmem:[%s1082 + $0x10] sm:$0xf]
        %v1088 = vld [vmem:[%s1082 + $0x14] sm:$0xf]
        %v1089 = vld [vmem:[%s1082 + $0x18] sm:$0xf]
        %v1090 = vld [vmem:[%s1082 + $0x1c] sm:$0xf]
        %v1091 = vld [vmem:[%s1082 + $0x20] sm:$0xf]
        %v1092 = vld [vmem:[%s1082 + $0x24] sm:$0xf]
        %v1093 = vld [vmem:[%s1082 + $0x28] sm:$0xf]
        %v1094 = vld [vmem:[%s1082 + $0x2c] sm:$0xf]
        %v1095 = vld [vmem:[%s1082 + $0x30] sm:$0xf]
        %v1096 = vld [vmem:[%s1082 + $0x34] sm:$0xf]
        %v1097 = vld [vmem:[%s1082 + $0x38] sm:$0xf]
        %v1098 = vld [vmem:[%s1082 + $0x3c] sm:$0xf]
        %v1100 = vshrl.u32 %v1064, 16
        %v1102 = vshll.u32 %v1064, 16
        %v1104 = vrot.slane %v1102, 1
        %v1105 = vor.u32 %v1100, %v1104
        %v1107 = vshll.u32 %v1081, 16
        %v1109 = vrot.slane %v1107, 1
        %v1110 = vsel %vm436, %v1105, %v1109
        %v1128 = vunpack.c.l.b16 %v1083
        %v1129 = vunpack.c.l.b16 %v1084
        %v1130 = vunpack.c.l.b16 %v1085
        %v1131 = vunpack.c.l.b16 %v1086
        %v1132 = vunpack.c.l.b16 %v1087
        %v1133 = vunpack.c.l.b16 %v1088
        %v1134 = vunpack.c.l.b16 %v1089
        %v1135 = vunpack.c.l.b16 %v1090
        %v1136 = vunpack.c.l.b16 %v1091
        %v1137 = vunpack.c.l.b16 %v1092
        %v1138 = vunpack.c.l.b16 %v1093
        %v1139 = vunpack.c.l.b16 %v1094
        %v1140 = vunpack.c.l.b16 %v1095
        %v1141 = vunpack.c.l.b16 %v1096
        %v1142 = vunpack.c.l.b16 %v1097
        %v1143 = vunpack.c.l.b16 %v1098
        %v1144 = vpack.c.b16 %v1129, %v1128
        %v1145 = vpack.c.b16 %v1131, %v1130
        %v1146 = vpack.c.b16 %v1133, %v1132
        %v1147 = vpack.c.b16 %v1135, %v1134
        %v1148 = vpack.c.b16 %v1137, %v1136
        %v1149 = vpack.c.b16 %v1139, %v1138
        %v1150 = vpack.c.b16 %v1141, %v1140
        %v1151 = vpack.c.b16 %v1143, %v1142
        %1160 = vmatprep.subr.bf16.mxu0 0
        %1161 = vmatpush1.bf16.msra.mxu0 %v1144
        %1162 = vmatprep.subr.bf16.mxu0 0
        %1163 = vmatpush1.bf16.msra.mxu0 %v1145
        %1164 = vmatprep.subr.bf16.mxu0 0
        %1165 = vmatpush1.bf16.msra.mxu0 %v1146
        %1166 = vmatprep.subr.bf16.mxu0 0
        %1167 = vmatpush1.bf16.msra.mxu0 %v1147
        %1168 = vmatprep.subr.bf16.mxu0 0
        %1169 = vmatpush1.bf16.msra.mxu0 %v1148
        %1170 = vmatprep.subr.bf16.mxu0 0
        %1171 = vmatpush1.bf16.msra.mxu0 %v1149
        %1172 = vmatprep.subr.bf16.mxu0 0
        %1173 = vmatpush1.bf16.msra.mxu0 %v1150
        %1174 = vmatprep.subr.bf16.mxu0 0
        %1175 = vmatpush1.bf16.msra.mxu0 %v1151
        %1176 = vmatprep.subr.bf16.mxu0 0
        %1177 = vmatpush1.bf16.msra.mxu0 0
        %1178 = vmatprep.subr.bf16.mxu0 0
        %1179 = vmatpush1.bf16.msra.mxu0 0
        %1180 = vmatprep.subr.bf16.mxu0 0
        %1181 = vmatpush1.bf16.msra.mxu0 0
        %1182 = vmatprep.subr.bf16.mxu0 0
        %1183 = vmatpush1.bf16.msra.mxu0 0
        %1184 = vmatprep.subr.bf16.mxu0 0
        %1185 = vmatpush1.bf16.msra.mxu0 0
        %1186 = vmatprep.subr.bf16.mxu0 0
        %1187 = vmatpush1.bf16.msra.mxu0 0
        %1188 = vmatprep.subr.bf16.mxu0 0
        %1189 = vmatpush1.bf16.msra.mxu0 0
        %1190 = vmatprep.subr.bf16.mxu0 0
        %1191 = vmatpush1.bf16.msra.mxu0 0
        %1192 = vmatprep.mubr.bf16.mxu0 0
        %1193 = vmatmul.mubr.bf16.gmra.mrb[0].mxu0 %v1110
        %v1194 = vpop.f32.mrb[0].mxu0
        %v1195 = vadd.f32 0.0, %v1194
        %v1196 = vpop.f32.mrb[0].mxu0
        %v1197 = vpop.f32.mrb[0].mxu0
        %v1198 = vadd.f32 0.0, %v1197
        %v1199 = vpop.f32.mrb[0].mxu0
        %1200 = vdwg.mxu0
        %v1217 = vunpack.c.l.b16 %v1065
        %v1218 = vunpack.c.l.b16 %v1066
        %v1219 = vunpack.c.l.b16 %v1067
        %v1220 = vunpack.c.l.b16 %v1068
        %v1221 = vunpack.c.l.b16 %v1069
        %v1222 = vunpack.c.l.b16 %v1070
        %v1223 = vunpack.c.l.b16 %v1071
        %v1224 = vunpack.c.l.b16 %v1072
        %v1225 = vunpack.c.l.b16 %v1073
        %v1226 = vunpack.c.l.b16 %v1074
        %v1227 = vunpack.c.l.b16 %v1075
        %v1228 = vunpack.c.l.b16 %v1076
        %v1229 = vunpack.c.l.b16 %v1077
        %v1230 = vunpack.c.l.b16 %v1078
        %v1231 = vunpack.c.l.b16 %v1079
        %v1232 = vunpack.c.l.b16 %v1080
        %v1233 = vpack.c.b16 %v1218, %v1217
        %v1234 = vpack.c.b16 %v1220, %v1219
        %v1235 = vpack.c.b16 %v1222, %v1221
        %v1236 = vpack.c.b16 %v1224, %v1223
        %v1237 = vpack.c.b16 %v1226, %v1225
        %v1238 = vpack.c.b16 %v1228, %v1227
        %v1239 = vpack.c.b16 %v1230, %v1229
        %v1240 = vpack.c.b16 %v1232, %v1231
        %1249 = vmatprep.subr.bf16.mxu0 0
        %1250 = vmatpush1.bf16.msra.mxu0 %v1233
        %1251 = vmatprep.subr.bf16.mxu0 0
        %1252 = vmatpush1.bf16.msra.mxu0 %v1234
        %1253 = vmatprep.subr.bf16.mxu0 0
        %1254 = vmatpush1.bf16.msra.mxu0 %v1235
        %1255 = vmatprep.subr.bf16.mxu0 0
        %1256 = vmatpush1.bf16.msra.mxu0 %v1236
        %1257 = vmatprep.subr.bf16.mxu0 0
        %1258 = vmatpush1.bf16.msra.mxu0 %v1237
        %1259 = vmatprep.subr.bf16.mxu0 0
        %1260 = vmatpush1.bf16.msra.mxu0 %v1238
        %1261 = vmatprep.subr.bf16.mxu0 0
        %1262 = vmatpush1.bf16.msra.mxu0 %v1239
        %1263 = vmatprep.subr.bf16.mxu0 0
        %1264 = vmatpush1.bf16.msra.mxu0 %v1240
        %1265 = vmatprep.subr.bf16.mxu0 0
        %1266 = vmatpush1.bf16.msra.mxu0 0
        %1267 = vmatprep.subr.bf16.mxu0 0
        %1268 = vmatpush1.bf16.msra.mxu0 0
        %1269 = vmatprep.subr.bf16.mxu0 0
        %1270 = vmatpush1.bf16.msra.mxu0 0
        %1271 = vmatprep.subr.bf16.mxu0 0
        %1272 = vmatpush1.bf16.msra.mxu0 0
        %1273 = vmatprep.subr.bf16.mxu0 0
        %1274 = vmatpush1.bf16.msra.mxu0 0
        %1275 = vmatprep.subr.bf16.mxu0 0
        %1276 = vmatpush1.bf16.msra.mxu0 0
        %1277 = vmatprep.subr.bf16.mxu0 0
        %1278 = vmatpush1.bf16.msra.mxu0 0
        %1279 = vmatprep.subr.bf16.mxu0 0
        %1280 = vmatpush1.bf16.msra.mxu0 0
        %1281 = vmatprep.mubr.bf16.mxu0 0
        %1282 = vmatmul.mubr.bf16.gmra.mrb[0].mxu0 %v1064
        %v1283 = vpop.f32.mrb[0].mxu0
        %v1284 = vadd.f32 %v1195, %v1283
        %v1285 = vpop.f32.mrb[0].mxu0
        %v1286 = vpop.f32.mrb[0].mxu0
        %v1287 = vadd.f32 %v1198, %v1286
        %v1288 = vpop.f32.mrb[0].mxu0
        %1289 = vdwg.mxu0
        %s1290 = scalar_lea.vmem %s3, 128
        %v1291 = vld [vmem:[%s1290] sm:$0xf]
        %v1292 = vld [vmem:[%s1290 + $0x4] sm:$0xf]
        %v1293 = vld [vmem:[%s1290 + $0x8] sm:$0xf]
        %v1294 = vld [vmem:[%s1290 + $0xc] sm:$0xf]
        %v1295 = vld [vmem:[%s1290 + $0x10] sm:$0xf]
        %v1296 = vld [vmem:[%s1290 + $0x14] sm:$0xf]
        %v1297 = vld [vmem:[%s1290 + $0x18] sm:$0xf]
        %v1298 = vld [vmem:[%s1290 + $0x1c] sm:$0xf]
        %v1299 = vld [vmem:[%s1290 + $0x20] sm:$0xf]
        %v1300 = vld [vmem:[%s1290 + $0x24] sm:$0xf]
        %v1301 = vld [vmem:[%s1290 + $0x28] sm:$0xf]
        %v1302 = vld [vmem:[%s1290 + $0x2c] sm:$0xf]
        %v1303 = vld [vmem:[%s1290 + $0x30] sm:$0xf]
        %v1304 = vld [vmem:[%s1290 + $0x34] sm:$0xf]
        %v1305 = vld [vmem:[%s1290 + $0x38] sm:$0xf]
        %v1306 = vld [vmem:[%s1290 + $0x3c] sm:$0xf]
        %v1309 = vrot.slane %v1064, 1
        %v1310 = vrot.slane %v1081, 1
        %v1311 = vsel %vm725, %v1309, %v1310
        %v1329 = vunpack.c.l.b16 %v1291
        %v1330 = vunpack.c.l.b16 %v1292
        %v1331 = vunpack.c.l.b16 %v1293
        %v1332 = vunpack.c.l.b16 %v1294
        %v1333 = vunpack.c.l.b16 %v1295
        %v1334 = vunpack.c.l.b16 %v1296
        %v1335 = vunpack.c.l.b16 %v1297
        %v1336 = vunpack.c.l.b16 %v1298
        %v1337 = vunpack.c.l.b16 %v1299
        %v1338 = vunpack.c.l.b16 %v1300
        %v1339 = vunpack.c.l.b16 %v1301
        %v1340 = vunpack.c.l.b16 %v1302
        %v1341 = vunpack.c.l.b16 %v1303
        %v1342 = vunpack.c.l.b16 %v1304
        %v1343 = vunpack.c.l.b16 %v1305
        %v1344 = vunpack.c.l.b16 %v1306
        %v1345 = vpack.c.b16 %v1330, %v1329
        %v1346 = vpack.c.b16 %v1332, %v1331
        %v1347 = vpack.c.b16 %v1334, %v1333
        %v1348 = vpack.c.b16 %v1336, %v1335
        %v1349 = vpack.c.b16 %v1338, %v1337
        %v1350 = vpack.c.b16 %v1340, %v1339
        %v1351 = vpack.c.b16 %v1342, %v1341
        %v1352 = vpack.c.b16 %v1344, %v1343
        %1361 = vmatprep.subr.bf16.mxu0 0
        %1362 = vmatpush1.bf16.msra.mxu0 %v1345
        %1363 = vmatprep.subr.bf16.mxu0 0
        %1364 = vmatpush1.bf16.msra.mxu0 %v1346
        %1365 = vmatprep.subr.bf16.mxu0 0
        %1366 = vmatpush1.bf16.msra.mxu0 %v1347
        %1367 = vmatprep.subr.bf16.mxu0 0
        %1368 = vmatpush1.bf16.msra.mxu0 %v1348
        %1369 = vmatprep.subr.bf16.mxu0 0
        %1370 = vmatpush1.bf16.msra.mxu0 %v1349
        %1371 = vmatprep.subr.bf16.mxu0 0
        %1372 = vmatpush1.bf16.msra.mxu0 %v1350
        %1373 = vmatprep.subr.bf16.mxu0 0
        %1374 = vmatpush1.bf16.msra.mxu0 %v1351
        %1375 = vmatprep.subr.bf16.mxu0 0
        %1376 = vmatpush1.bf16.msra.mxu0 %v1352
        %1377 = vmatprep.subr.bf16.mxu0 0
        %1378 = vmatpush1.bf16.msra.mxu0 0
        %1379 = vmatprep.subr.bf16.mxu0 0
        %1380 = vmatpush1.bf16.msra.mxu0 0
        %1381 = vmatprep.subr.bf16.mxu0 0
        %1382 = vmatpush1.bf16.msra.mxu0 0
        %1383 = vmatprep.subr.bf16.mxu0 0
        %1384 = vmatpush1.bf16.msra.mxu0 0
        %1385 = vmatprep.subr.bf16.mxu0 0
        %1386 = vmatpush1.bf16.msra.mxu0 0
        %1387 = vmatprep.subr.bf16.mxu0 0
        %1388 = vmatpush1.bf16.msra.mxu0 0
        %1389 = vmatprep.subr.bf16.mxu0 0
        %1390 = vmatpush1.bf16.msra.mxu0 0
        %1391 = vmatprep.subr.bf16.mxu0 0
        %1392 = vmatpush1.bf16.msra.mxu0 0
        %1393 = vmatprep.mubr.bf16.mxu0 0
        %1394 = vmatmul.mubr.bf16.gmra.mrb[0].mxu0 %v1311
        %v1395 = vpop.f32.mrb[0].mxu0
        %v1396 = vadd.f32 0.0, %v1395
        %v1397 = vpop.f32.mrb[0].mxu0
        %v1398 = vpop.f32.mrb[0].mxu0
        %v1399 = vadd.f32 0.0, %v1398
        %v1400 = vpop.f32.mrb[0].mxu0
        %1401 = vdwg.mxu0
        %v1402 = vadd.f32 %v1284, %v1396
        %v1403 = vadd.f32 %v1287, %v1399
        %v1404 = vld [vmem:[%s4] sm:$0x1]
        %v1406 = vlaneseq
        %v1407 = vshrl.u32 %v1406, 7
        %v1408 = vsub.s32 0, %v1407
        %v1409 = vrot.slane %v1404, %v1408
        %v1411 = vadd.f32 %v1402, %v1409
        %v1412 = vadd.f32 %v1403, %v1409
        %v1413 = vmax.f32 %v1411, 0.0
        %v1414 = vmax.f32 %v1412, 0.0
        %v1417 = vcombine.high %v1413, %v1413
        %v1418 = vcombine.high %v1414, %v1414
        %v1421 = vsel %vm907, %v1413, -inf
        %v1422 = vrot.slane %v1421, 4
        %v1423 = vmax.f32 %v1421, %v1422
        %v1424 = vrot.slane %v1423, 2
        %v1425 = vmax.f32 %v1423, %v1424
        %v1426 = vrot.slane %v1425, 1
        %v1427 = vmax.f32 %v1425, %v1426
        %v1428 = vsel %vm907, %v1417, -inf
        %v1429 = vrot.slane %v1428, 4
        %v1430 = vmax.f32 %v1428, %v1429
        %v1431 = vrot.slane %v1430, 2
        %v1432 = vmax.f32 %v1430, %v1431
        %v1433 = vrot.slane %v1432, 1
        %v1434 = vmax.f32 %v1432, %v1433
        %v1435 = vsel %vm907, %v1414, -inf
        %v1436 = vrot.slane %v1435, 4
        %v1437 = vmax.f32 %v1435, %v1436
        %v1438 = vrot.slane %v1437, 2
        %v1439 = vmax.f32 %v1437, %v1438
        %v1440 = vrot.slane %v1439, 1
        %v1441 = vmax.f32 %v1439, %v1440
        %v1442 = vsel %vm907, %v1418, -inf
        %v1443 = vrot.slane %v1442, 4
        %v1444 = vmax.f32 %v1442, %v1443
        %v1445 = vrot.slane %v1444, 2
        %v1446 = vmax.f32 %v1444, %v1445
        %v1447 = vrot.slane %v1446, 1
        %v1448 = vmax.f32 %v1446, %v1447
        %v1453 = vsel %vm1036, %v1434, %v1427
        %v1454 = vsel %vm1038, %v1441, %v1453
        %v1455 = vsel %vm1040, %v1448, %v1454
        %1457 = vst [vmem:[#allocation3 + $0x1] sm:$0xf] %v1455
        %v1458 = vld [vmem:[#allocation3] sm:$0x3f]
        %v1459 = vpack.c.bf16 %v1458, %v1458
        %v1460 = vld [vmem:[%s5] sm:$0xf]
        %v1461 = vld [vmem:[%s5 + $0x4] sm:$0xf]
        %v1462 = vld [vmem:[%s5 + $0x8] sm:$0xf]
        %v1463 = vld [vmem:[%s5 + $0xc] sm:$0xf]
        %v1464 = vld [vmem:[%s5 + $0x10] sm:$0xf]
        %v1465 = vld [vmem:[%s5 + $0x14] sm:$0xf]
        %v1466 = vld [vmem:[%s5 + $0x18] sm:$0xf]
        %v1467 = vld [vmem:[%s5 + $0x1c] sm:$0xf]
        %v1468 = vld [vmem:[%s5 + $0x20] sm:$0xf]
        %v1469 = vld [vmem:[%s5 + $0x24] sm:$0xf]
        %v1470 = vld [vmem:[%s5 + $0x28] sm:$0xf]
        %v1471 = vld [vmem:[%s5 + $0x2c] sm:$0xf]
        %v1472 = vld [vmem:[%s5 + $0x30] sm:$0xf]
        %v1473 = vld [vmem:[%s5 + $0x34] sm:$0xf]
        %v1474 = vld [vmem:[%s5 + $0x38] sm:$0xf]
        %v1475 = vld [vmem:[%s5 + $0x3c] sm:$0xf]
        %s1476 = scalar_lea.vmem %s5, 64
        %v1477 = vld [vmem:[%s1476] sm:$0xf]
        %v1478 = vld [vmem:[%s1476 + $0x4] sm:$0xf]
        %v1479 = vld [vmem:[%s1476 + $0x8] sm:$0xf]
        %v1480 = vld [vmem:[%s1476 + $0xc] sm:$0xf]
        %v1481 = vld [vmem:[%s1476 + $0x10] sm:$0xf]
        %v1482 = vld [vmem:[%s1476 + $0x14] sm:$0xf]
        %v1483 = vld [vmem:[%s1476 + $0x18] sm:$0xf]
        %v1484 = vld [vmem:[%s1476 + $0x1c] sm:$0xf]
        %v1485 = vld [vmem:[%s1476 + $0x20] sm:$0xf]
        %v1486 = vld [vmem:[%s1476 + $0x24] sm:$0xf]
        %v1487 = vld [vmem:[%s1476 + $0x28] sm:$0xf]
        %v1488 = vld [vmem:[%s1476 + $0x2c] sm:$0xf]
        %v1489 = vld [vmem:[%s1476 + $0x30] sm:$0xf]
        %v1490 = vld [vmem:[%s1476 + $0x34] sm:$0xf]
        %v1491 = vld [vmem:[%s1476 + $0x38] sm:$0xf]
        %v1492 = vld [vmem:[%s1476 + $0x3c] sm:$0xf]
        %v1494 = vshrl.u32 %v1459, 16
        %v1496 = vshll.u32 %v1459, 16
        %v1498 = vrot.slane %v1496, 1
        %v1499 = vor.u32 %v1494, %v1498
        %v1517 = vunpack.c.l.b16 %v1477
        %v1518 = vunpack.c.l.b16 %v1478
        %v1519 = vunpack.c.l.b16 %v1479
        %v1520 = vunpack.c.l.b16 %v1480
        %v1521 = vunpack.c.l.b16 %v1481
        %v1522 = vunpack.c.l.b16 %v1482
        %v1523 = vunpack.c.l.b16 %v1483
        %v1524 = vunpack.c.l.b16 %v1484
        %v1525 = vunpack.c.l.b16 %v1485
        %v1526 = vunpack.c.l.b16 %v1486
        %v1527 = vunpack.c.l.b16 %v1487
        %v1528 = vunpack.c.l.b16 %v1488
        %v1529 = vunpack.c.l.b16 %v1489
        %v1530 = vunpack.c.l.b16 %v1490
        %v1531 = vunpack.c.l.b16 %v1491
        %v1532 = vunpack.c.l.b16 %v1492
        %v1533 = vpack.c.b16 %v1518, %v1517
        %v1534 = vpack.c.b16 %v1520, %v1519
        %v1535 = vpack.c.b16 %v1522, %v1521
        %v1536 = vpack.c.b16 %v1524, %v1523
        %v1537 = vpack.c.b16 %v1526, %v1525
        %v1538 = vpack.c.b16 %v1528, %v1527
        %v1539 = vpack.c.b16 %v1530, %v1529
        %v1540 = vpack.c.b16 %v1532, %v1531
        %1549 = vmatprep.subr.bf16.mxu0 0
        %1550 = vmatpush1.bf16.msra.mxu0 %v1533
        %1551 = vmatprep.subr.bf16.mxu0 0
        %1552 = vmatpush1.bf16.msra.mxu0 %v1534
        %1553 = vmatprep.subr.bf16.mxu0 0
        %1554 = vmatpush1.bf16.msra.mxu0 %v1535
        %1555 = vmatprep.subr.bf16.mxu0 0
        %1556 = vmatpush1.bf16.msra.mxu0 %v1536
        %1557 = vmatprep.subr.bf16.mxu0 0
        %1558 = vmatpush1.bf16.msra.mxu0 %v1537
        %1559 = vmatprep.subr.bf16.mxu0 0
        %1560 = vmatpush1.bf16.msra.mxu0 %v1538
        %1561 = vmatprep.subr.bf16.mxu0 0
        %1562 = vmatpush1.bf16.msra.mxu0 %v1539
        %1563 = vmatprep.subr.bf16.mxu0 0
        %1564 = vmatpush1.bf16.msra.mxu0 %v1540
        %1565 = vmatprep.subr.bf16.mxu0 0
        %1566 = vmatpush1.bf16.msra.mxu0 0
        %1567 = vmatprep.subr.bf16.mxu0 0
        %1568 = vmatpush1.bf16.msra.mxu0 0
        %1569 = vmatprep.subr.bf16.mxu0 0
        %1570 = vmatpush1.bf16.msra.mxu0 0
        %1571 = vmatprep.subr.bf16.mxu0 0
        %1572 = vmatpush1.bf16.msra.mxu0 0
        %1573 = vmatprep.subr.bf16.mxu0 0
        %1574 = vmatpush1.bf16.msra.mxu0 0
        %1575 = vmatprep.subr.bf16.mxu0 0
        %1576 = vmatpush1.bf16.msra.mxu0 0
        %1577 = vmatprep.subr.bf16.mxu0 0
        %1578 = vmatpush1.bf16.msra.mxu0 0
        %1579 = vmatprep.subr.bf16.mxu0 0
        %1580 = vmatpush1.bf16.msra.mxu0 0
        %1581 = vmatprep.mubr.bf16.mxu0 0
        %1582 = vmatmul.mubr.bf16.gmra.mrb[0].mxu0 %v1499
        %v1583 = vpop.f32.mrb[0].mxu0
        %v1584 = vadd.f32 0.0, %v1583
        %v1585 = vpop.f32.mrb[0].mxu0
        %v1586 = vpop.f32.mrb[0].mxu0
        %v1587 = vpop.f32.mrb[0].mxu0
        %1588 = vdwg.mxu0
        %v1605 = vunpack.c.l.b16 %v1460
        %v1606 = vunpack.c.l.b16 %v1461
        %v1607 = vunpack.c.l.b16 %v1462
        %v1608 = vunpack.c.l.b16 %v1463
        %v1609 = vunpack.c.l.b16 %v1464
        %v1610 = vunpack.c.l.b16 %v1465
        %v1611 = vunpack.c.l.b16 %v1466
        %v1612 = vunpack.c.l.b16 %v1467
        %v1613 = vunpack.c.l.b16 %v1468
        %v1614 = vunpack.c.l.b16 %v1469
        %v1615 = vunpack.c.l.b16 %v1470
        %v1616 = vunpack.c.l.b16 %v1471
        %v1617 = vunpack.c.l.b16 %v1472
        %v1618 = vunpack.c.l.b16 %v1473
        %v1619 = vunpack.c.l.b16 %v1474
        %v1620 = vunpack.c.l.b16 %v1475
        %v1621 = vpack.c.b16 %v1606, %v1605
        %v1622 = vpack.c.b16 %v1608, %v1607
        %v1623 = vpack.c.b16 %v1610, %v1609
        %v1624 = vpack.c.b16 %v1612, %v1611
        %v1625 = vpack.c.b16 %v1614, %v1613
        %v1626 = vpack.c.b16 %v1616, %v1615
        %v1627 = vpack.c.b16 %v1618, %v1617
        %v1628 = vpack.c.b16 %v1620, %v1619
        %1637 = vmatprep.subr.bf16.mxu0 0
        %1638 = vmatpush1.bf16.msra.mxu0 %v1621
        %1639 = vmatprep.subr.bf16.mxu0 0
        %1640 = vmatpush1.bf16.msra.mxu0 %v1622
        %1641 = vmatprep.subr.bf16.mxu0 0
        %1642 = vmatpush1.bf16.msra.mxu0 %v1623
        %1643 = vmatprep.subr.bf16.mxu0 0
        %1644 = vmatpush1.bf16.msra.mxu0 %v1624
        %1645 = vmatprep.subr.bf16.mxu0 0
        %1646 = vmatpush1.bf16.msra.mxu0 %v1625
        %1647 = vmatprep.subr.bf16.mxu0 0
        %1648 = vmatpush1.bf16.msra.mxu0 %v1626
        %1649 = vmatprep.subr.bf16.mxu0 0
        %1650 = vmatpush1.bf16.msra.mxu0 %v1627
        %1651 = vmatprep.subr.bf16.mxu0 0
        %1652 = vmatpush1.bf16.msra.mxu0 %v1628
        %1653 = vmatprep.subr.bf16.mxu0 0
        %1654 = vmatpush1.bf16.msra.mxu0 0
        %1655 = vmatprep.subr.bf16.mxu0 0
        %1656 = vmatpush1.bf16.msra.mxu0 0
        %1657 = vmatprep.subr.bf16.mxu0 0
        %1658 = vmatpush1.bf16.msra.mxu0 0
        %1659 = vmatprep.subr.bf16.mxu0 0
        %1660 = vmatpush1.bf16.msra.mxu0 0
        %1661 = vmatprep.subr.bf16.mxu0 0
        %1662 = vmatpush1.bf16.msra.mxu0 0
        %1663 = vmatprep.subr.bf16.mxu0 0
        %1664 = vmatpush1.bf16.msra.mxu0 0
        %1665 = vmatprep.subr.bf16.mxu0 0
        %1666 = vmatpush1.bf16.msra.mxu0 0
        %1667 = vmatprep.subr.bf16.mxu0 0
        %1668 = vmatpush1.bf16.msra.mxu0 0
        %1669 = vmatprep.mubr.bf16.mxu0 0
        %1670 = vmatmul.mubr.bf16.gmra.mrb[0].mxu0 %v1459
        %v1671 = vpop.f32.mrb[0].mxu0
        %v1672 = vadd.f32 %v1584, %v1671
        %v1673 = vpop.f32.mrb[0].mxu0
        %v1674 = vpop.f32.mrb[0].mxu0
        %v1675 = vpop.f32.mrb[0].mxu0
        %1676 = vdwg.mxu0
        %s1677 = scalar_lea.vmem %s5, 128
        %v1678 = vld [vmem:[%s1677] sm:$0xf]
        %v1679 = vld [vmem:[%s1677 + $0x4] sm:$0xf]
        %v1680 = vld [vmem:[%s1677 + $0x8] sm:$0xf]
        %v1681 = vld [vmem:[%s1677 + $0xc] sm:$0xf]
        %v1682 = vld [vmem:[%s1677 + $0x10] sm:$0xf]
        %v1683 = vld [vmem:[%s1677 + $0x14] sm:$0xf]
        %v1684 = vld [vmem:[%s1677 + $0x18] sm:$0xf]
        %v1685 = vld [vmem:[%s1677 + $0x1c] sm:$0xf]
        %v1686 = vld [vmem:[%s1677 + $0x20] sm:$0xf]
        %v1687 = vld [vmem:[%s1677 + $0x24] sm:$0xf]
        %v1688 = vld [vmem:[%s1677 + $0x28] sm:$0xf]
        %v1689 = vld [vmem:[%s1677 + $0x2c] sm:$0xf]
        %v1690 = vld [vmem:[%s1677 + $0x30] sm:$0xf]
        %v1691 = vld [vmem:[%s1677 + $0x34] sm:$0xf]
        %v1692 = vld [vmem:[%s1677 + $0x38] sm:$0xf]
        %v1693 = vld [vmem:[%s1677 + $0x3c] sm:$0xf]
        %v1695 = vrot.slane %v1459, 1
        %v1713 = vunpack.c.l.b16 %v1678
        %v1714 = vunpack.c.l.b16 %v1679
        %v1715 = vunpack.c.l.b16 %v1680
        %v1716 = vunpack.c.l.b16 %v1681
        %v1717 = vunpack.c.l.b16 %v1682
        %v1718 = vunpack.c.l.b16 %v1683
        %v1719 = vunpack.c.l.b16 %v1684
        %v1720 = vunpack.c.l.b16 %v1685
        %v1721 = vunpack.c.l.b16 %v1686
        %v1722 = vunpack.c.l.b16 %v1687
        %v1723 = vunpack.c.l.b16 %v1688
        %v1724 = vunpack.c.l.b16 %v1689
        %v1725 = vunpack.c.l.b16 %v1690
        %v1726 = vunpack.c.l.b16 %v1691
        %v1727 = vunpack.c.l.b16 %v1692
        %v1728 = vunpack.c.l.b16 %v1693
        %v1729 = vpack.c.b16 %v1714, %v1713
        %v1730 = vpack.c.b16 %v1716, %v1715
        %v1731 = vpack.c.b16 %v1718, %v1717
        %v1732 = vpack.c.b16 %v1720, %v1719
        %v1733 = vpack.c.b16 %v1722, %v1721
        %v1734 = vpack.c.b16 %v1724, %v1723
        %v1735 = vpack.c.b16 %v1726, %v1725
        %v1736 = vpack.c.b16 %v1728, %v1727
        %1745 = vmatprep.subr.bf16.mxu0 0
        %1746 = vmatpush1.bf16.msra.mxu0 %v1729
        %1747 = vmatprep.subr.bf16.mxu0 0
        %1748 = vmatpush1.bf16.msra.mxu0 %v1730
        %1749 = vmatprep.subr.bf16.mxu0 0
        %1750 = vmatpush1.bf16.msra.mxu0 %v1731
        %1751 = vmatprep.subr.bf16.mxu0 0
        %1752 = vmatpush1.bf16.msra.mxu0 %v1732
        %1753 = vmatprep.subr.bf16.mxu0 0
        %1754 = vmatpush1.bf16.msra.mxu0 %v1733
        %1755 = vmatprep.subr.bf16.mxu0 0
        %1756 = vmatpush1.bf16.msra.mxu0 %v1734
        %1757 = vmatprep.subr.bf16.mxu0 0
        %1758 = vmatpush1.bf16.msra.mxu0 %v1735
        %1759 = vmatprep.subr.bf16.mxu0 0
        %1760 = vmatpush1.bf16.msra.mxu0 %v1736
        %1761 = vmatprep.subr.bf16.mxu0 0
        %1762 = vmatpush1.bf16.msra.mxu0 0
        %1763 = vmatprep.subr.bf16.mxu0 0
        %1764 = vmatpush1.bf16.msra.mxu0 0
        %1765 = vmatprep.subr.bf16.mxu0 0
        %1766 = vmatpush1.bf16.msra.mxu0 0
        %1767 = vmatprep.subr.bf16.mxu0 0
        %1768 = vmatpush1.bf16.msra.mxu0 0
        %1769 = vmatprep.subr.bf16.mxu0 0
        %1770 = vmatpush1.bf16.msra.mxu0 0
        %1771 = vmatprep.subr.bf16.mxu0 0
        %1772 = vmatpush1.bf16.msra.mxu0 0
        %1773 = vmatprep.subr.bf16.mxu0 0
        %1774 = vmatpush1.bf16.msra.mxu0 0
        %1775 = vmatprep.subr.bf16.mxu0 0
        %1776 = vmatpush1.bf16.msra.mxu0 0
        %1777 = vmatprep.mubr.bf16.mxu0 0
        %1778 = vmatmul.mubr.bf16.gmra.mrb[0].mxu0 %v1695
        %v1779 = vpop.f32.mrb[0].mxu0
        %v1780 = vadd.f32 0.0, %v1779
        %v1781 = vpop.f32.mrb[0].mxu0
        %v1782 = vpop.f32.mrb[0].mxu0
        %v1783 = vpop.f32.mrb[0].mxu0
        %1784 = vdwg.mxu0
        %v1785 = vadd.f32 %v1672, %v1780
        %v1786 = vld [vmem:[%s6] sm:$0x1]
        %v1788 = vlaneseq
        %v1789 = vshrl.u32 %v1788, 7
        %v1790 = vsub.s32 0, %v1789
        %v1791 = vrot.slane %v1786, %v1790
        %v1793 = vadd.f32 %v1785, %v1791
        %v1794 = vmax.f32 %v1793, 0.0
        %v1795 = vsel %vm907, %v1794, -inf
        %v1796 = vrot.slane %v1795, 4
        %v1797 = vmax.f32 %v1795, %v1796
        %v1798 = vrot.slane %v1797, 2
        %v1799 = vmax.f32 %v1797, %v1798
        %v1800 = vrot.slane %v1799, 1
        %v1801 = vmax.f32 %v1799, %v1800
        %v1802 = vpack.c.bf16 %v1801, %v1801
        %v1803 = vld [vmem:[%s7] sm:$0xf]
        %v1804 = vld [vmem:[%s7 + $0x4] sm:$0xf]
        %v1805 = vld [vmem:[%s7 + $0x8] sm:$0xf]
        %v1806 = vld [vmem:[%s7 + $0xc] sm:$0xf]
        %v1807 = vld [vmem:[%s7 + $0x10] sm:$0xf]
        %v1808 = vld [vmem:[%s7 + $0x14] sm:$0xf]
        %v1809 = vld [vmem:[%s7 + $0x18] sm:$0xf]
        %v1810 = vld [vmem:[%s7 + $0x1c] sm:$0xf]
        %v1811 = vld [vmem:[%s7 + $0x20] sm:$0xf]
        %v1812 = vld [vmem:[%s7 + $0x24] sm:$0xf]
        %v1813 = vld [vmem:[%s7 + $0x28] sm:$0xf]
        %v1814 = vld [vmem:[%s7 + $0x2c] sm:$0xf]
        %v1815 = vld [vmem:[%s7 + $0x30] sm:$0xf]
        %v1816 = vld [vmem:[%s7 + $0x34] sm:$0xf]
        %v1817 = vld [vmem:[%s7 + $0x38] sm:$0xf]
        %v1818 = vld [vmem:[%s7 + $0x3c] sm:$0xf]
        %v1819 = vld [vmem:[%s8] sm:$0x1]
        %v1836 = vunpack.c.l.b16 %v1803
        %v1837 = vunpack.c.l.b16 %v1804
        %v1838 = vunpack.c.l.b16 %v1805
        %v1839 = vunpack.c.l.b16 %v1806
        %v1840 = vunpack.c.l.b16 %v1807
        %v1841 = vunpack.c.l.b16 %v1808
        %v1842 = vunpack.c.l.b16 %v1809
        %v1843 = vunpack.c.l.b16 %v1810
        %v1844 = vunpack.c.l.b16 %v1811
        %v1845 = vunpack.c.l.b16 %v1812
        %v1846 = vunpack.c.l.b16 %v1813
        %v1847 = vunpack.c.l.b16 %v1814
        %v1848 = vunpack.c.l.b16 %v1815
        %v1849 = vunpack.c.l.b16 %v1816
        %v1850 = vunpack.c.l.b16 %v1817
        %v1851 = vunpack.c.l.b16 %v1818
        %v1852 = vpack.c.b16 %v1837, %v1836
        %v1853 = vpack.c.b16 %v1839, %v1838
        %v1854 = vpack.c.b16 %v1841, %v1840
        %v1855 = vpack.c.b16 %v1843, %v1842
        %v1856 = vpack.c.b16 %v1845, %v1844
        %v1857 = vpack.c.b16 %v1847, %v1846
        %v1858 = vpack.c.b16 %v1849, %v1848
        %v1859 = vpack.c.b16 %v1851, %v1850
        %1868 = vmatprep.subr.bf16.mxu0 0
        %1869 = vmatpush1.bf16.msra.mxu0 %v1852
        %1870 = vmatprep.subr.bf16.mxu0 0
        %1871 = vmatpush1.bf16.msra.mxu0 %v1853
        %1872 = vmatprep.subr.bf16.mxu0 0
        %1873 = vmatpush1.bf16.msra.mxu0 %v1854
        %1874 = vmatprep.subr.bf16.mxu0 0
        %1875 = vmatpush1.bf16.msra.mxu0 %v1855
        %1876 = vmatprep.subr.bf16.mxu0 0
        %1877 = vmatpush1.bf16.msra.mxu0 %v1856
        %1878 = vmatprep.subr.bf16.mxu0 0
        %1879 = vmatpush1.bf16.msra.mxu0 %v1857
        %1880 = vmatprep.subr.bf16.mxu0 0
        %1881 = vmatpush1.bf16.msra.mxu0 %v1858
        %1882 = vmatprep.subr.bf16.mxu0 0
        %1883 = vmatpush1.bf16.msra.mxu0 %v1859
        %1884 = vmatprep.subr.bf16.mxu0 0
        %1885 = vmatpush1.bf16.msra.mxu0 0
        %1886 = vmatprep.subr.bf16.mxu0 0
        %1887 = vmatpush1.bf16.msra.mxu0 0
        %1888 = vmatprep.subr.bf16.mxu0 0
        %1889 = vmatpush1.bf16.msra.mxu0 0
        %1890 = vmatprep.subr.bf16.mxu0 0
        %1891 = vmatpush1.bf16.msra.mxu0 0
        %1892 = vmatprep.subr.bf16.mxu0 0
        %1893 = vmatpush1.bf16.msra.mxu0 0
        %1894 = vmatprep.subr.bf16.mxu0 0
        %1895 = vmatpush1.bf16.msra.mxu0 0
        %1896 = vmatprep.subr.bf16.mxu0 0
        %1897 = vmatpush1.bf16.msra.mxu0 0
        %1898 = vmatprep.subr.bf16.mxu0 0
        %1899 = vmatpush1.bf16.msra.mxu0 0
        %1900 = vmatprep.mubr.bf16.mxu0 0
        %1901 = vmatmul.mubr.bf16.gmra.mrb[0].mxu0 %v1802
        %v1902 = vpop.f32.mrb[0].mxu0
        %v1903 = vadd.f32 %v1819, %v1902
        %v1904 = vpop.f32.mrb[0].mxu0
        %v1905 = vpop.f32.mrb[0].mxu0
        %v1906 = vpop.f32.mrb[0].mxu0
        %1907 = vdwg.mxu0
        %v1908 = vmax.f32 %v1903, 0.0
        %v1909 = vpack.c.bf16 %v1908, %v1908
        %v1910 = vld [vmem:[%s9] sm:$0xf]
        %v1911 = vld [vmem:[%s9 + $0x4] sm:$0xf]
        %v1912 = vld [vmem:[%s9 + $0x8] sm:$0xf]
        %v1913 = vld [vmem:[%s9 + $0xc] sm:$0xf]
        %v1914 = vld [vmem:[%s9 + $0x10] sm:$0xf]
        %v1915 = vld [vmem:[%s9 + $0x14] sm:$0xf]
        %v1916 = vld [vmem:[%s9 + $0x18] sm:$0xf]
        %v1917 = vld [vmem:[%s9 + $0x1c] sm:$0xf]
        %v1918 = vld [vmem:[%s9 + $0x20] sm:$0xf]
        %v1919 = vld [vmem:[%s9 + $0x24] sm:$0xf]
        %v1920 = vld [vmem:[%s9 + $0x28] sm:$0xf]
        %v1921 = vld [vmem:[%s9 + $0x2c] sm:$0xf]
        %v1922 = vld [vmem:[%s9 + $0x30] sm:$0xf]
        %v1923 = vld [vmem:[%s9 + $0x34] sm:$0xf]
        %v1924 = vld [vmem:[%s9 + $0x38] sm:$0xf]
        %v1925 = vld [vmem:[%s9 + $0x3c] sm:$0xf]
        %v1926 = vld [vmem:[%s10] sm:$0x1]
        %v1943 = vunpack.c.l.b16 %v1910
        %v1944 = vunpack.c.l.b16 %v1911
        %v1945 = vunpack.c.l.b16 %v1912
        %v1946 = vunpack.c.l.b16 %v1913
        %v1947 = vunpack.c.l.b16 %v1914
        %v1948 = vunpack.c.l.b16 %v1915
        %v1949 = vunpack.c.l.b16 %v1916
        %v1950 = vunpack.c.l.b16 %v1917
        %v1951 = vunpack.c.l.b16 %v1918
        %v1952 = vunpack.c.l.b16 %v1919
        %v1953 = vunpack.c.l.b16 %v1920
        %v1954 = vunpack.c.l.b16 %v1921
        %v1955 = vunpack.c.l.b16 %v1922
        %v1956 = vunpack.c.l.b16 %v1923
        %v1957 = vunpack.c.l.b16 %v1924
        %v1958 = vunpack.c.l.b16 %v1925
        %v1959 = vpack.c.b16 %v1944, %v1943
        %v1960 = vpack.c.b16 %v1946, %v1945
        %v1961 = vpack.c.b16 %v1948, %v1947
        %v1962 = vpack.c.b16 %v1950, %v1949
        %v1963 = vpack.c.b16 %v1952, %v1951
        %v1964 = vpack.c.b16 %v1954, %v1953
        %v1965 = vpack.c.b16 %v1956, %v1955
        %v1966 = vpack.c.b16 %v1958, %v1957
        %1975 = vmatprep.subr.bf16.mxu0 0
        %1976 = vmatpush1.bf16.msra.mxu0 %v1959
        %1977 = vmatprep.subr.bf16.mxu0 0
        %1978 = vmatpush1.bf16.msra.mxu0 %v1960
        %1979 = vmatprep.subr.bf16.mxu0 0
        %1980 = vmatpush1.bf16.msra.mxu0 %v1961
        %1981 = vmatprep.subr.bf16.mxu0 0
        %1982 = vmatpush1.bf16.msra.mxu0 %v1962
        %1983 = vmatprep.subr.bf16.mxu0 0
        %1984 = vmatpush1.bf16.msra.mxu0 %v1963
        %1985 = vmatprep.subr.bf16.mxu0 0
        %1986 = vmatpush1.bf16.msra.mxu0 %v1964
        %1987 = vmatprep.subr.bf16.mxu0 0
        %1988 = vmatpush1.bf16.msra.mxu0 %v1965
        %1989 = vmatprep.subr.bf16.mxu0 0
        %1990 = vmatpush1.bf16.msra.mxu0 %v1966
        %1991 = vmatprep.subr.bf16.mxu0 0
        %1992 = vmatpush1.bf16.msra.mxu0 0
        %1993 = vmatprep.subr.bf16.mxu0 0
        %1994 = vmatpush1.bf16.msra.mxu0 0
        %1995 = vmatprep.subr.bf16.mxu0 0
        %1996 = vmatpush1.bf16.msra.mxu0 0
        %1997 = vmatprep.subr.bf16.mxu0 0
        %1998 = vmatpush1.bf16.msra.mxu0 0
        %1999 = vmatprep.subr.bf16.mxu0 0
        %2000 = vmatpush1.bf16.msra.mxu0 0
        %2001 = vmatprep.subr.bf16.mxu0 0
        %2002 = vmatpush1.bf16.msra.mxu0 0
        %2003 = vmatprep.subr.bf16.mxu0 0
        %2004 = vmatpush1.bf16.msra.mxu0 0
        %2005 = vmatprep.subr.bf16.mxu0 0
        %2006 = vmatpush1.bf16.msra.mxu0 0
        %2007 = vmatprep.mubr.bf16.mxu0 0
        %2008 = vmatmul.mubr.bf16.gmra.mrb[0].mxu0 %v1909
        %v2009 = vpop.f32.mrb[0].mxu0
        %v2010 = vadd.f32 %v1926, %v2009
        %v2011 = vpop.f32.mrb[0].mxu0
        %v2012 = vpop.f32.mrb[0].mxu0
        %v2013 = vpop.f32.mrb[0].mxu0
        %2014 = vdwg.mxu0
        %2015 = vst [vmem:[%s378] sm:$0x1] %v2010
        %s2016 = sand.u32 %s269, 1
        %s2017 = scalar_lea.sflag [#allocation5], %s2016
        %s2018 = sand.u32 %s269, 1
        %s2019 = scalar_lea.vmem [#allocation4], %s2018
        // Predicated region
        $region65: #{_lambda_.1} parent=63 // pred_check
          %p2020 = pneg %p279
        $region66: #{_lambda_.1} parent=63 // pred_check_branch
          %2022 = sbr.rel (%p2020) target = $region68
        $region67: #{_lambda_.1} parent=63 // pred_region
          %s2024 = ssub.s32 16, 16
          %2025 = vsyncadd %s2017, %s2024
          %s2026 = smul.addr %s25, 16
          %s2027 = scalar_lea.hbm %s11, %s2026
          %s2029 = sshll.u32 %s2019, 4
          %s2030 = int_to_ptr.vmem [resolvable:$true] %s2029
          %2032 = dma.vmem_to_hbm [thread:$0]  %s2030, 16, %s2027, %s2017
        $region68: #{_lambda_.1} parent=63 // pred_fallthru
          _
      $region64: #{_lambda_.1} parent=5 // pred_fallthru
        _
      %p2033 = scmp.le.s32.totalorder 2, %s20
      // Predicated region
      $region69: #{_lambda_.1} parent=5 // pred_check
        %p2034 = pneg %p2033
      $region70: #{_lambda_.1} parent=5 // pred_check_branch
        %2036 = sbr.rel (%p2034) target = $region72
      $region71: #{_lambda_.1} parent=5 // pred_region
        %s2037 = ssub.s32 %s20, 2
        // Predicated region
        $region73: #{_lambda_.1} parent=71 // pred_check
          %p2038 = pneg %p285
        $region74: #{_lambda_.1} parent=71 // pred_check_branch
          %2040 = sbr.rel (%p2038) target = $region76
        $region75: #{_lambda_.1} parent=71 // pred_region
          %s2041 = sand.u32 %s270, 1
          %s2042 = scalar_lea.sflag [#allocation5], %s2041
          %s2043 = sand.u32 %s270, 1
          %s2044 = scalar_lea.vmem [#allocation4], %s2043
          %2045 = dma.done %s2042, 16
        $region76: #{_lambda_.1} parent=71 // pred_fallthru
          _
      $region72: #{_lambda_.1} parent=5 // pred_fallthru
        _
    $region6: #{_lambda_.1} parent=1 // loop_footer
      %s24 = sadd.s32 1, %s20
    $region7: #{_lambda_.1} parent=1 // loop_footer_branch
      %19 = sbr.rel target = $region3
    $region8: #{_lambda_.1} parent=1 // loop_exit
      _
    %2046 = vsyncpa [#allocation5], 1
    %s2047 = scalar_lea.sflag [#allocation5], 1
    %2048 = vsyncpa %s2047, 1

</llo_original>
